<compile_context>
chip_gen: v5e
topology: v5e:2x2
jax: 0.10.0
libtpu: 0.0.40
codegen_flags: <defaults>
</compile_context>

<pallas_src>
import jax
import jax.numpy as jnp
from jax.experimental import pallas as pl
from jax.experimental.pallas import tpu as pltpu


def gru_kernel(x_ref,      # (T*B, I) f32  time-major flattened input
               wi0_ref,    # (I, 3H)  f32  layer-0 input weights, fused r|z|n
               wh0_ref,    # (H, 3H)  bf16 layer-0 hidden weights, fused
               b0_ref,     # (1, 3H)  f32  [bi_r+bh_r | bi_z+bh_z | bi_n]
               bh0n_ref,   # (1, H)   f32  layer-0 b_hn (stays inside r*(...))
               wi1_ref,    # (H, 3H)  bf16 layer-1 input weights, fused
               wh1_ref,    # (H, 3H)  bf16 layer-1 hidden weights, fused
               b1_ref,     # (1, 3H)  f32  [bi_r+bh_r | bi_z+bh_z | bi_n]
               bh1n_ref,   # (1, H)   f32  layer-1 b_hn
               wfc_ref,    # (1, H)   f32  final Linear weight (row)
               bfc_ref,    # (1, 1)   f32  final Linear bias
               out_ref):   # (B, 1)   f32
    B = out_ref.shape[0]
    T = x_ref.shape[0] // B
    H = wh0_ref.shape[0]
    f32 = jnp.float32
    bf16 = jnp.bfloat16

    # ---- Layer-0 input projection, hoisted off the serial critical path ----
    # One well-shaped (T*B, I) x (I, 3H) matmul; r/z input+hidden biases are
    # already folded into b0, n gets b_in only (b_hn added inside the loop).
    g0 = jnp.dot(x_ref[...], wi0_ref[...], preferred_element_type=f32) + b0_ref[...]

    # Resident fused weights (bf16 -> native MXU dtype, half the vreg footprint)
    # and biases pre-broadcast ONCE (JAX does not CSE broadcast_in_dim).
    wh0 = wh0_ref[...]
    wi1 = wi1_ref[...]
    wh1 = wh1_ref[...]
    b1 = jnp.broadcast_to(b1_ref[...], (B, 3 * H))
    bh0n = jnp.broadcast_to(bh0n_ref[...], (B, H))
    bh1n = jnp.broadcast_to(bh1n_ref[...], (B, H))

    h1 = jnp.zeros((B, H), f32)
    h2 = jnp.zeros((B, H), f32)

    # T is small and static -> fully unrolled recurrence (static slices, and the
    # scheduler can overlap layer-1 MXU pushes with layer-0 EUP/VPU epilogues).
    for t in range(T):
        # ----- layer 0 cell (PyTorch gate order r, z, n) -----
        gi0 = g0[t * B:(t + 1) * B, :]                                 # (B, 3H)
        gh0 = jnp.dot(h1.astype(bf16), wh0, preferred_element_type=f32)
        r0 = jax.nn.sigmoid(gi0[:, 0:H] + gh0[:, 0:H])
        z0 = jax.nn.sigmoid(gi0[:, H:2 * H] + gh0[:, H:2 * H])
        n0 = jnp.tanh(gi0[:, 2 * H:] + r0 * (gh0[:, 2 * H:] + bh0n))
        h1 = (1.0 - z0) * n0 + z0 * h1

        # ----- layer 1 cell -----
        gi1 = jnp.dot(h1.astype(bf16), wi1, preferred_element_type=f32) + b1
        gh1 = jnp.dot(h2.astype(bf16), wh1, preferred_element_type=f32)
        r1 = jax.nn.sigmoid(gi1[:, 0:H] + gh1[:, 0:H])
        z1 = jax.nn.sigmoid(gi1[:, H:2 * H] + gh1[:, H:2 * H])
        n1 = jnp.tanh(gi1[:, 2 * H:] + r1 * (gh1[:, 2 * H:] + bh1n))
        h2 = (1.0 - z1) * n1 + z1 * h2

    # ---- Final Linear(H, 1): VPU multiply + lane reduction (no N=1 MXU op) ----
    out_ref[...] = (jnp.sum(h2 * wfc_ref[...], axis=-1, keepdims=True)
                    + bfc_ref[...])


def gru_forward(x, params):
    """x: (B, T, I) float32 -> (B, 1) float32 (batch_first, fc on last step)."""
    B, T, I = x.shape
    # Time-major flatten so row t*B+b of the hoisted projection is (t, b).
    x_flat = jnp.transpose(x, (1, 0, 2)).reshape(T * B, I)
    vmem = pl.BlockSpec(memory_space=pltpu.MemorySpace.VMEM)
    args = (x_flat,
            params["wi0"], params["wh0"], params["b0"], params["bh0n"],
            params["wi1"], params["wh1"], params["b1"], params["bh1n"],
            params["wfc"], params["bfc"])
    # Note: the recurrence is batch-independent; for real batch sizes on v7x a
    # grid over B with dimension_semantics=("parallel",) would use both TCs.
    return pl.pallas_call(
        gru_kernel,
        out_shape=jax.ShapeDtypeStruct((B, 1), jnp.float32),
        in_specs=[vmem] * len(args),
        out_specs=vmem,
        compiler_params=pltpu.CompilerParams(
            vmem_limit_bytes=32 * 1024 * 1024),
    )(*args)


def init_params(key, input_size=1, hidden_size=64):
    """Raw PyTorch-layout params, default init U(-1/sqrt(H), 1/sqrt(H))."""
    H, I = hidden_size, input_size
    k = 1.0 / jnp.sqrt(jnp.float32(H))
    keys = jax.random.split(key, 10)

    def unif(kk, shape):
        return jax.random.uniform(kk, shape, jnp.float32, -k, k)

    return {
        "w_ih_l0": unif(keys[0], (3 * H, I)),
        "w_hh_l0": unif(keys[1], (3 * H, H)),
        "b_ih_l0": unif(keys[2], (3 * H,)),
        "b_hh_l0": unif(keys[3], (3 * H,)),
        "w_ih_l1": unif(keys[4], (3 * H, H)),
        "w_hh_l1": unif(keys[5], (3 * H, H)),
        "b_ih_l1": unif(keys[6], (3 * H,)),
        "b_hh_l1": unif(keys[7], (3 * H,)),
        "w_fc": unif(keys[8], (1, H)),
        "b_fc": unif(keys[9], (1,)),
    }


def pack_params(raw):
    """PyTorch layout -> fused kernel layout (weights transposed to (in, 3H),
    hidden/in-loop weights in bf16, r/z biases folded, b_hn kept separate)."""
    H = raw["w_hh_l0"].shape[1]

    def fuse_bias(b_ih, b_hh):
        b_ih = b_ih.reshape(1, 3 * H)
        b_hh = b_hh.reshape(1, 3 * H)
        combined = jnp.concatenate(
            [b_ih[:, :2 * H] + b_hh[:, :2 * H], b_ih[:, 2 * H:]], axis=1)
        return combined, b_hh[:, 2 * H:]          # (1, 3H), (1, H)

    b0, bh0n = fuse_bias(raw["b_ih_l0"], raw["b_hh_l0"])
    b1, bh1n = fuse_bias(raw["b_ih_l1"], raw["b_hh_l1"])
    return {
        "wi0": raw["w_ih_l0"].T,                              # (I, 3H) f32 (off critical path)
        "wh0": raw["w_hh_l0"].T.astype(jnp.bfloat16),         # (H, 3H)
        "b0": b0, "bh0n": bh0n,
        "wi1": raw["w_ih_l1"].T.astype(jnp.bfloat16),         # (H, 3H)
        "wh1": raw["w_hh_l1"].T.astype(jnp.bfloat16),         # (H, 3H)
        "b1": b1, "bh1n": bh1n,
        "wfc": raw["w_fc"],                                   # (1, H)
        "bfc": raw["b_fc"].reshape(1, 1),                     # (1, 1)
    }


def gru_forward_ref(x, raw):
    """Pure-JAX f32 reference with the original PyTorch math/layout."""
    B, T, I = x.shape
    H = raw["w_hh_l0"].shape[1]

    def cell(x_t, h, w_ih, w_hh, b_ih, b_hh):
        gi = x_t @ w_ih.T + b_ih
        gh = h @ w_hh.T + b_hh
        r = jax.nn.sigmoid(gi[:, :H] + gh[:, :H])
        z = jax.nn.sigmoid(gi[:, H:2 * H] + gh[:, H:2 * H])
        n = jnp.tanh(gi[:, 2 * H:] + r * gh[:, 2 * H:])
        return (1.0 - z) * n + z * h

    h1 = jnp.zeros((B, H), jnp.float32)
    h2 = jnp.zeros((B, H), jnp.float32)
    for t in range(T):
        x_t = x[:, t, :]
        h1 = cell(x_t, h1, raw["w_ih_l0"], raw["w_hh_l0"],
                  raw["b_ih_l0"], raw["b_hh_l0"])
        h2 = cell(h1, h2, raw["w_ih_l1"], raw["w_hh_l1"],
                  raw["b_ih_l1"], raw["b_hh_l1"])
    return h2 @ raw["w_fc"].T + raw["b_fc"]


if __name__ == "__main__":
    B, T, I, H = 2, 8, 1, 64
    key = jax.random.PRNGKey(0)
    k_x, k_p = jax.random.split(key)
    x = jax.random.normal(k_x, (B, T, I), jnp.float32)
    raw = init_params(k_p, input_size=I, hidden_size=H)
    params = pack_params(raw)

    out = jax.block_until_ready(gru_forward(x, params))
    ref = gru_forward_ref(x, raw)

    assert out.shape == (B, 1)
    # bf16 MXU operands with f32 accumulation -> slightly relaxed tolerance.
    assert jnp.allclose(out, ref, atol=2e-2, rtol=2e-2), (out, ref)
    print("KERNEL_OK")
</pallas_src>

<mosaic_0001>
module attributes {stable_mosaic.version = 11 : i64} {
  func.func @gru_kernel(%arg0: memref<16x1xf32, #tpu.memory_space<vmem>>, %arg1: memref<1x192xf32, #tpu.memory_space<vmem>>, %arg2: memref<64x192xbf16, #tpu.memory_space<vmem>>, %arg3: memref<1x192xf32, #tpu.memory_space<vmem>>, %arg4: memref<1x64xf32, #tpu.memory_space<vmem>>, %arg5: memref<64x192xbf16, #tpu.memory_space<vmem>>, %arg6: memref<64x192xbf16, #tpu.memory_space<vmem>>, %arg7: memref<1x192xf32, #tpu.memory_space<vmem>>, %arg8: memref<1x64xf32, #tpu.memory_space<vmem>>, %arg9: memref<1x64xf32, #tpu.memory_space<vmem>>, %arg10: memref<1x1xf32, #tpu.memory_space<vmem>>, %arg11: memref<2x1xf32, #tpu.memory_space<vmem>>) attributes {dimension_semantics = [], scalar_prefetch = 0 : i64, scratch_operands = 0 : i64, tpu.core_type = #tpu.core_type<tc>} {
    %c0 = arith.constant 0 : index
    %c0_0 = arith.constant 0 : index
    %0 = vector.load %arg0[%c0, %c0_0] : memref<16x1xf32, #tpu.memory_space<vmem>>, vector<16x1xf32>
    %c0_1 = arith.constant 0 : index
    %c0_2 = arith.constant 0 : index
    %1 = vector.load %arg1[%c0_1, %c0_2] : memref<1x192xf32, #tpu.memory_space<vmem>>, vector<1x192xf32>
    %cst = arith.constant dense<0.000000e+00> : vector<16x192xf32>
    %2 = tpu.matmul %0, %1, %cst {dimension_numbers = #tpu.dot_dimension_numbers<[1], [0], [0], [1], [0, 0, 1, 1], [], []>} : vector<16x1xf32>, vector<1x192xf32>, vector<16x192xf32> -> vector<16x192xf32>
    %c0_3 = arith.constant 0 : index
    %c0_4 = arith.constant 0 : index
    %3 = vector.load %arg3[%c0_3, %c0_4] : memref<1x192xf32, #tpu.memory_space<vmem>>, vector<1x192xf32>
    %4 = vector.broadcast %3 : vector<1x192xf32> to vector<16x192xf32>
    %5 = arith.addf %2, %4 : vector<16x192xf32>
    %c0_5 = arith.constant 0 : index
    %c0_6 = arith.constant 0 : index
    %6 = vector.load %arg2[%c0_5, %c0_6] : memref<64x192xbf16, #tpu.memory_space<vmem>>, vector<64x192xbf16>
    %c0_7 = arith.constant 0 : index
    %c0_8 = arith.constant 0 : index
    %7 = vector.load %arg5[%c0_7, %c0_8] : memref<64x192xbf16, #tpu.memory_space<vmem>>, vector<64x192xbf16>
    %c0_9 = arith.constant 0 : index
    %c0_10 = arith.constant 0 : index
    %8 = vector.load %arg6[%c0_9, %c0_10] : memref<64x192xbf16, #tpu.memory_space<vmem>>, vector<64x192xbf16>
    %c0_11 = arith.constant 0 : index
    %c0_12 = arith.constant 0 : index
    %9 = vector.load %arg7[%c0_11, %c0_12] : memref<1x192xf32, #tpu.memory_space<vmem>>, vector<1x192xf32>
    %10 = vector.shape_cast %9 : vector<1x192xf32> to vector<1x192xf32>
    %11 = vector.broadcast %10 : vector<1x192xf32> to vector<2x192xf32>
    %c0_13 = arith.constant 0 : index
    %c0_14 = arith.constant 0 : index
    %12 = vector.load %arg4[%c0_13, %c0_14] : memref<1x64xf32, #tpu.memory_space<vmem>>, vector<1x64xf32>
    %13 = vector.shape_cast %12 : vector<1x64xf32> to vector<1x64xf32>
    %14 = vector.broadcast %13 : vector<1x64xf32> to vector<2x64xf32>
    %c0_15 = arith.constant 0 : index
    %c0_16 = arith.constant 0 : index
    %15 = vector.load %arg8[%c0_15, %c0_16] : memref<1x64xf32, #tpu.memory_space<vmem>>, vector<1x64xf32>
    %16 = vector.shape_cast %15 : vector<1x64xf32> to vector<1x64xf32>
    %17 = vector.broadcast %16 : vector<1x64xf32> to vector<2x64xf32>
    %cst_17 = arith.constant 0.000000e+00 : f32
    %18 = vector.broadcast %cst_17 : f32 to vector<2x64xf32>
    %cst_18 = arith.constant 0.000000e+00 : f32
    %19 = vector.broadcast %cst_18 : f32 to vector<2x64xf32>
    %20 = vector.extract_strided_slice %5 {offsets = [0, 0], sizes = [2, 192], strides = [1, 1]} : vector<16x192xf32> to vector<2x192xf32>
    %21 = arith.truncf %18 : vector<2x64xf32> to vector<2x64xbf16>
    %cst_19 = arith.constant dense<0.000000e+00> : vector<2x192xf32>
    %22 = tpu.matmul %21, %6, %cst_19 {dimension_numbers = #tpu.dot_dimension_numbers<[1], [0], [0], [1], [0, 0, 1, 1], [], []>} : vector<2x64xbf16>, vector<64x192xbf16>, vector<2x192xf32> -> vector<2x192xf32>
    %23 = vector.extract_strided_slice %20 {offsets = [0, 0], sizes = [2, 64], strides = [1, 1]} : vector<2x192xf32> to vector<2x64xf32>
    %24 = vector.extract_strided_slice %22 {offsets = [0, 0], sizes = [2, 64], strides = [1, 1]} : vector<2x192xf32> to vector<2x64xf32>
    %25 = arith.addf %23, %24 : vector<2x64xf32>
    %26 = arith.negf %25 : vector<2x64xf32>
    %27 = math.exp %26 : vector<2x64xf32>
    %cst_20 = arith.constant 1.000000e+00 : f32
    %28 = vector.broadcast %cst_20 : f32 to vector<2x64xf32>
    %29 = arith.addf %28, %27 : vector<2x64xf32>
    %30 = arith.divf %28, %29 : vector<2x64xf32>
    %31 = vector.extract_strided_slice %20 {offsets = [0, 64], sizes = [2, 64], strides = [1, 1]} : vector<2x192xf32> to vector<2x64xf32>
    %32 = vector.extract_strided_slice %22 {offsets = [0, 64], sizes = [2, 64], strides = [1, 1]} : vector<2x192xf32> to vector<2x64xf32>
    %33 = arith.addf %31, %32 : vector<2x64xf32>
    %34 = arith.negf %33 : vector<2x64xf32>
    %35 = math.exp %34 : vector<2x64xf32>
    %cst_21 = arith.constant 1.000000e+00 : f32
    %36 = vector.broadcast %cst_21 : f32 to vector<2x64xf32>
    %37 = arith.addf %36, %35 : vector<2x64xf32>
    %38 = arith.divf %36, %37 : vector<2x64xf32>
    %39 = vector.extract_strided_slice %20 {offsets = [0, 128], sizes = [2, 64], strides = [1, 1]} : vector<2x192xf32> to vector<2x64xf32>
    %40 = vector.extract_strided_slice %22 {offsets = [0, 128], sizes = [2, 64], strides = [1, 1]} : vector<2x192xf32> to vector<2x64xf32>
    %41 = arith.addf %40, %14 : vector<2x64xf32>
    %42 = arith.mulf %30, %41 : vector<2x64xf32>
    %43 = arith.addf %39, %42 : vector<2x64xf32>
    %44 = math.tanh %43 : vector<2x64xf32>
    %cst_22 = arith.constant 1.000000e+00 : f32
    %45 = vector.broadcast %cst_22 : f32 to vector<2x64xf32>
    %46 = arith.subf %45, %38 : vector<2x64xf32>
    %47 = arith.mulf %46, %44 : vector<2x64xf32>
    %48 = arith.mulf %38, %18 : vector<2x64xf32>
    %49 = arith.addf %47, %48 : vector<2x64xf32>
    %50 = arith.truncf %49 : vector<2x64xf32> to vector<2x64xbf16>
    %cst_23 = arith.constant dense<0.000000e+00> : vector<2x192xf32>
    %51 = tpu.matmul %50, %7, %cst_23 {dimension_numbers = #tpu.dot_dimension_numbers<[1], [0], [0], [1], [0, 0, 1, 1], [], []>} : vector<2x64xbf16>, vector<64x192xbf16>, vector<2x192xf32> -> vector<2x192xf32>
    %52 = arith.addf %51, %11 : vector<2x192xf32>
    %53 = arith.truncf %19 : vector<2x64xf32> to vector<2x64xbf16>
    %cst_24 = arith.constant dense<0.000000e+00> : vector<2x192xf32>
    %54 = tpu.matmul %53, %8, %cst_24 {dimension_numbers = #tpu.dot_dimension_numbers<[1], [0], [0], [1], [0, 0, 1, 1], [], []>} : vector<2x64xbf16>, vector<64x192xbf16>, vector<2x192xf32> -> vector<2x192xf32>
    %55 = vector.extract_strided_slice %52 {offsets = [0, 0], sizes = [2, 64], strides = [1, 1]} : vector<2x192xf32> to vector<2x64xf32>
    %56 = vector.extract_strided_slice %54 {offsets = [0, 0], sizes = [2, 64], strides = [1, 1]} : vector<2x192xf32> to vector<2x64xf32>
    %57 = arith.addf %55, %56 : vector<2x64xf32>
    %58 = arith.negf %57 : vector<2x64xf32>
    %59 = math.exp %58 : vector<2x64xf32>
    %cst_25 = arith.constant 1.000000e+00 : f32
    %60 = vector.broadcast %cst_25 : f32 to vector<2x64xf32>
    %61 = arith.addf %60, %59 : vector<2x64xf32>
    %62 = arith.divf %60, %61 : vector<2x64xf32>
    %63 = vector.extract_strided_slice %52 {offsets = [0, 64], sizes = [2, 64], strides = [1, 1]} : vector<2x192xf32> to vector<2x64xf32>
    %64 = vector.extract_strided_slice %54 {offsets = [0, 64], sizes = [2, 64], strides = [1, 1]} : vector<2x192xf32> to vector<2x64xf32>
    %65 = arith.addf %63, %64 : vector<2x64xf32>
    %66 = arith.negf %65 : vector<2x64xf32>
    %67 = math.exp %66 : vector<2x64xf32>
    %cst_26 = arith.constant 1.000000e+00 : f32
    %68 = vector.broadcast %cst_26 : f32 to vector<2x64xf32>
    %69 = arith.addf %68, %67 : vector<2x64xf32>
    %70 = arith.divf %68, %69 : vector<2x64xf32>
    %71 = vector.extract_strided_slice %52 {offsets = [0, 128], sizes = [2, 64], strides = [1, 1]} : vector<2x192xf32> to vector<2x64xf32>
    %72 = vector.extract_strided_slice %54 {offsets = [0, 128], sizes = [2, 64], strides = [1, 1]} : vector<2x192xf32> to vector<2x64xf32>
    %73 = arith.addf %72, %17 : vector<2x64xf32>
    %74 = arith.mulf %62, %73 : vector<2x64xf32>
    %75 = arith.addf %71, %74 : vector<2x64xf32>
    %76 = math.tanh %75 : vector<2x64xf32>
    %cst_27 = arith.constant 1.000000e+00 : f32
    %77 = vector.broadcast %cst_27 : f32 to vector<2x64xf32>
    %78 = arith.subf %77, %70 : vector<2x64xf32>
    %79 = arith.mulf %78, %76 : vector<2x64xf32>
    %80 = arith.mulf %70, %19 : vector<2x64xf32>
    %81 = arith.addf %79, %80 : vector<2x64xf32>
    %82 = vector.extract_strided_slice %5 {offsets = [2, 0], sizes = [2, 192], strides = [1, 1]} : vector<16x192xf32> to vector<2x192xf32>
    %83 = arith.truncf %49 : vector<2x64xf32> to vector<2x64xbf16>
    %cst_28 = arith.constant dense<0.000000e+00> : vector<2x192xf32>
    %84 = tpu.matmul %83, %6, %cst_28 {dimension_numbers = #tpu.dot_dimension_numbers<[1], [0], [0], [1], [0, 0, 1, 1], [], []>} : vector<2x64xbf16>, vector<64x192xbf16>, vector<2x192xf32> -> vector<2x192xf32>
    %85 = vector.extract_strided_slice %82 {offsets = [0, 0], sizes = [2, 64], strides = [1, 1]} : vector<2x192xf32> to vector<2x64xf32>
    %86 = vector.extract_strided_slice %84 {offsets = [0, 0], sizes = [2, 64], strides = [1, 1]} : vector<2x192xf32> to vector<2x64xf32>
    %87 = arith.addf %85, %86 : vector<2x64xf32>
    %88 = arith.negf %87 : vector<2x64xf32>
    %89 = math.exp %88 : vector<2x64xf32>
    %cst_29 = arith.constant 1.000000e+00 : f32
    %90 = vector.broadcast %cst_29 : f32 to vector<2x64xf32>
    %91 = arith.addf %90, %89 : vector<2x64xf32>
    %92 = arith.divf %90, %91 : vector<2x64xf32>
    %93 = vector.extract_strided_slice %82 {offsets = [0, 64], sizes = [2, 64], strides = [1, 1]} : vector<2x192xf32> to vector<2x64xf32>
    %94 = vector.extract_strided_slice %84 {offsets = [0, 64], sizes = [2, 64], strides = [1, 1]} : vector<2x192xf32> to vector<2x64xf32>
    %95 = arith.addf %93, %94 : vector<2x64xf32>
    %96 = arith.negf %95 : vector<2x64xf32>
    %97 = math.exp %96 : vector<2x64xf32>
    %cst_30 = arith.constant 1.000000e+00 : f32
    %98 = vector.broadcast %cst_30 : f32 to vector<2x64xf32>
    %99 = arith.addf %98, %97 : vector<2x64xf32>
    %100 = arith.divf %98, %99 : vector<2x64xf32>
    %101 = vector.extract_strided_slice %82 {offsets = [0, 128], sizes = [2, 64], strides = [1, 1]} : vector<2x192xf32> to vector<2x64xf32>
    %102 = vector.extract_strided_slice %84 {offsets = [0, 128], sizes = [2, 64], strides = [1, 1]} : vector<2x192xf32> to vector<2x64xf32>
    %103 = arith.addf %102, %14 : vector<2x64xf32>
    %104 = arith.mulf %92, %103 : vector<2x64xf32>
    %105 = arith.addf %101, %104 : vector<2x64xf32>
    %106 = math.tanh %105 : vector<2x64xf32>
    %cst_31 = arith.constant 1.000000e+00 : f32
    %107 = vector.broadcast %cst_31 : f32 to vector<2x64xf32>
    %108 = arith.subf %107, %100 : vector<2x64xf32>
    %109 = arith.mulf %108, %106 : vector<2x64xf32>
    %110 = arith.mulf %100, %49 : vector<2x64xf32>
    %111 = arith.addf %109, %110 : vector<2x64xf32>
    %112 = arith.truncf %111 : vector<2x64xf32> to vector<2x64xbf16>
    %cst_32 = arith.constant dense<0.000000e+00> : vector<2x192xf32>
    %113 = tpu.matmul %112, %7, %cst_32 {dimension_numbers = #tpu.dot_dimension_numbers<[1], [0], [0], [1], [0, 0, 1, 1], [], []>} : vector<2x64xbf16>, vector<64x192xbf16>, vector<2x192xf32> -> vector<2x192xf32>
    %114 = arith.addf %113, %11 : vector<2x192xf32>
    %115 = arith.truncf %81 : vector<2x64xf32> to vector<2x64xbf16>
    %cst_33 = arith.constant dense<0.000000e+00> : vector<2x192xf32>
    %116 = tpu.matmul %115, %8, %cst_33 {dimension_numbers = #tpu.dot_dimension_numbers<[1], [0], [0], [1], [0, 0, 1, 1], [], []>} : vector<2x64xbf16>, vector<64x192xbf16>, vector<2x192xf32> -> vector<2x192xf32>
    %117 = vector.extract_strided_slice %114 {offsets = [0, 0], sizes = [2, 64], strides = [1, 1]} : vector<2x192xf32> to vector<2x64xf32>
    %118 = vector.extract_strided_slice %116 {offsets = [0, 0], sizes = [2, 64], strides = [1, 1]} : vector<2x192xf32> to vector<2x64xf32>
    %119 = arith.addf %117, %118 : vector<2x64xf32>
    %120 = arith.negf %119 : vector<2x64xf32>
    %121 = math.exp %120 : vector<2x64xf32>
    %cst_34 = arith.constant 1.000000e+00 : f32
    %122 = vector.broadcast %cst_34 : f32 to vector<2x64xf32>
    %123 = arith.addf %122, %121 : vector<2x64xf32>
    %124 = arith.divf %122, %123 : vector<2x64xf32>
    %125 = vector.extract_strided_slice %114 {offsets = [0, 64], sizes = [2, 64], strides = [1, 1]} : vector<2x192xf32> to vector<2x64xf32>
    %126 = vector.extract_strided_slice %116 {offsets = [0, 64], sizes = [2, 64], strides = [1, 1]} : vector<2x192xf32> to vector<2x64xf32>
    %127 = arith.addf %125, %126 : vector<2x64xf32>
    %128 = arith.negf %127 : vector<2x64xf32>
    %129 = math.exp %128 : vector<2x64xf32>
    %cst_35 = arith.constant 1.000000e+00 : f32
    %130 = vector.broadcast %cst_35 : f32 to vector<2x64xf32>
    %131 = arith.addf %130, %129 : vector<2x64xf32>
    %132 = arith.divf %130, %131 : vector<2x64xf32>
    %133 = vector.extract_strided_slice %114 {offsets = [0, 128], sizes = [2, 64], strides = [1, 1]} : vector<2x192xf32> to vector<2x64xf32>
    %134 = vector.extract_strided_slice %116 {offsets = [0, 128], sizes = [2, 64], strides = [1, 1]} : vector<2x192xf32> to vector<2x64xf32>
    %135 = arith.addf %134, %17 : vector<2x64xf32>
    %136 = arith.mulf %124, %135 : vector<2x64xf32>
    %137 = arith.addf %133, %136 : vector<2x64xf32>
    %138 = math.tanh %137 : vector<2x64xf32>
    %cst_36 = arith.constant 1.000000e+00 : f32
    %139 = vector.broadcast %cst_36 : f32 to vector<2x64xf32>
    %140 = arith.subf %139, %132 : vector<2x64xf32>
    %141 = arith.mulf %140, %138 : vector<2x64xf32>
    %142 = arith.mulf %132, %81 : vector<2x64xf32>
    %143 = arith.addf %141, %142 : vector<2x64xf32>
    %144 = vector.extract_strided_slice %5 {offsets = [4, 0], sizes = [2, 192], strides = [1, 1]} : vector<16x192xf32> to vector<2x192xf32>
    %145 = arith.truncf %111 : vector<2x64xf32> to vector<2x64xbf16>
    %cst_37 = arith.constant dense<0.000000e+00> : vector<2x192xf32>
    %146 = tpu.matmul %145, %6, %cst_37 {dimension_numbers = #tpu.dot_dimension_numbers<[1], [0], [0], [1], [0, 0, 1, 1], [], []>} : vector<2x64xbf16>, vector<64x192xbf16>, vector<2x192xf32> -> vector<2x192xf32>
    %147 = vector.extract_strided_slice %144 {offsets = [0, 0], sizes = [2, 64], strides = [1, 1]} : vector<2x192xf32> to vector<2x64xf32>
    %148 = vector.extract_strided_slice %146 {offsets = [0, 0], sizes = [2, 64], strides = [1, 1]} : vector<2x192xf32> to vector<2x64xf32>
    %149 = arith.addf %147, %148 : vector<2x64xf32>
    %150 = arith.negf %149 : vector<2x64xf32>
    %151 = math.exp %150 : vector<2x64xf32>
    %cst_38 = arith.constant 1.000000e+00 : f32
    %152 = vector.broadcast %cst_38 : f32 to vector<2x64xf32>
    %153 = arith.addf %152, %151 : vector<2x64xf32>
    %154 = arith.divf %152, %153 : vector<2x64xf32>
    %155 = vector.extract_strided_slice %144 {offsets = [0, 64], sizes = [2, 64], strides = [1, 1]} : vector<2x192xf32> to vector<2x64xf32>
    %156 = vector.extract_strided_slice %146 {offsets = [0, 64], sizes = [2, 64], strides = [1, 1]} : vector<2x192xf32> to vector<2x64xf32>
    %157 = arith.addf %155, %156 : vector<2x64xf32>
    %158 = arith.negf %157 : vector<2x64xf32>
    %159 = math.exp %158 : vector<2x64xf32>
    %cst_39 = arith.constant 1.000000e+00 : f32
    %160 = vector.broadcast %cst_39 : f32 to vector<2x64xf32>
    %161 = arith.addf %160, %159 : vector<2x64xf32>
    %162 = arith.divf %160, %161 : vector<2x64xf32>
    %163 = vector.extract_strided_slice %144 {offsets = [0, 128], sizes = [2, 64], strides = [1, 1]} : vector<2x192xf32> to vector<2x64xf32>
    %164 = vector.extract_strided_slice %146 {offsets = [0, 128], sizes = [2, 64], strides = [1, 1]} : vector<2x192xf32> to vector<2x64xf32>
    %165 = arith.addf %164, %14 : vector<2x64xf32>
    %166 = arith.mulf %154, %165 : vector<2x64xf32>
    %167 = arith.addf %163, %166 : vector<2x64xf32>
    %168 = math.tanh %167 : vector<2x64xf32>
    %cst_40 = arith.constant 1.000000e+00 : f32
    %169 = vector.broadcast %cst_40 : f32 to vector<2x64xf32>
    %170 = arith.subf %169, %162 : vector<2x64xf32>
    %171 = arith.mulf %170, %168 : vector<2x64xf32>
    %172 = arith.mulf %162, %111 : vector<2x64xf32>
    %173 = arith.addf %171, %172 : vector<2x64xf32>
    %174 = arith.truncf %173 : vector<2x64xf32> to vector<2x64xbf16>
    %cst_41 = arith.constant dense<0.000000e+00> : vector<2x192xf32>
    %175 = tpu.matmul %174, %7, %cst_41 {dimension_numbers = #tpu.dot_dimension_numbers<[1], [0], [0], [1], [0, 0, 1, 1], [], []>} : vector<2x64xbf16>, vector<64x192xbf16>, vector<2x192xf32> -> vector<2x192xf32>
    %176 = arith.addf %175, %11 : vector<2x192xf32>
    %177 = arith.truncf %143 : vector<2x64xf32> to vector<2x64xbf16>
    %cst_42 = arith.constant dense<0.000000e+00> : vector<2x192xf32>
    %178 = tpu.matmul %177, %8, %cst_42 {dimension_numbers = #tpu.dot_dimension_numbers<[1], [0], [0], [1], [0, 0, 1, 1], [], []>} : vector<2x64xbf16>, vector<64x192xbf16>, vector<2x192xf32> -> vector<2x192xf32>
    %179 = vector.extract_strided_slice %176 {offsets = [0, 0], sizes = [2, 64], strides = [1, 1]} : vector<2x192xf32> to vector<2x64xf32>
    %180 = vector.extract_strided_slice %178 {offsets = [0, 0], sizes = [2, 64], strides = [1, 1]} : vector<2x192xf32> to vector<2x64xf32>
    %181 = arith.addf %179, %180 : vector<2x64xf32>
    %182 = arith.negf %181 : vector<2x64xf32>
    %183 = math.exp %182 : vector<2x64xf32>
    %cst_43 = arith.constant 1.000000e+00 : f32
    %184 = vector.broadcast %cst_43 : f32 to vector<2x64xf32>
    %185 = arith.addf %184, %183 : vector<2x64xf32>
    %186 = arith.divf %184, %185 : vector<2x64xf32>
    %187 = vector.extract_strided_slice %176 {offsets = [0, 64], sizes = [2, 64], strides = [1, 1]} : vector<2x192xf32> to vector<2x64xf32>
    %188 = vector.extract_strided_slice %178 {offsets = [0, 64], sizes = [2, 64], strides = [1, 1]} : vector<2x192xf32> to vector<2x64xf32>
    %189 = arith.addf %187, %188 : vector<2x64xf32>
    %190 = arith.negf %189 : vector<2x64xf32>
    %191 = math.exp %190 : vector<2x64xf32>
    %cst_44 = arith.constant 1.000000e+00 : f32
    %192 = vector.broadcast %cst_44 : f32 to vector<2x64xf32>
    %193 = arith.addf %192, %191 : vector<2x64xf32>
    %194 = arith.divf %192, %193 : vector<2x64xf32>
    %195 = vector.extract_strided_slice %176 {offsets = [0, 128], sizes = [2, 64], strides = [1, 1]} : vector<2x192xf32> to vector<2x64xf32>
    %196 = vector.extract_strided_slice %178 {offsets = [0, 128], sizes = [2, 64], strides = [1, 1]} : vector<2x192xf32> to vector<2x64xf32>
    %197 = arith.addf %196, %17 : vector<2x64xf32>
    %198 = arith.mulf %186, %197 : vector<2x64xf32>
    %199 = arith.addf %195, %198 : vector<2x64xf32>
    %200 = math.tanh %199 : vector<2x64xf32>
    %cst_45 = arith.constant 1.000000e+00 : f32
    %201 = vector.broadcast %cst_45 : f32 to vector<2x64xf32>
    %202 = arith.subf %201, %194 : vector<2x64xf32>
    %203 = arith.mulf %202, %200 : vector<2x64xf32>
    %204 = arith.mulf %194, %143 : vector<2x64xf32>
    %205 = arith.addf %203, %204 : vector<2x64xf32>
    %206 = vector.extract_strided_slice %5 {offsets = [6, 0], sizes = [2, 192], strides = [1, 1]} : vector<16x192xf32> to vector<2x192xf32>
    %207 = arith.truncf %173 : vector<2x64xf32> to vector<2x64xbf16>
    %cst_46 = arith.constant dense<0.000000e+00> : vector<2x192xf32>
    %208 = tpu.matmul %207, %6, %cst_46 {dimension_numbers = #tpu.dot_dimension_numbers<[1], [0], [0], [1], [0, 0, 1, 1], [], []>} : vector<2x64xbf16>, vector<64x192xbf16>, vector<2x192xf32> -> vector<2x192xf32>
    %209 = vector.extract_strided_slice %206 {offsets = [0, 0], sizes = [2, 64], strides = [1, 1]} : vector<2x192xf32> to vector<2x64xf32>
    %210 = vector.extract_strided_slice %208 {offsets = [0, 0], sizes = [2, 64], strides = [1, 1]} : vector<2x192xf32> to vector<2x64xf32>
    %211 = arith.addf %209, %210 : vector<2x64xf32>
    %212 = arith.negf %211 : vector<2x64xf32>
    %213 = math.exp %212 : vector<2x64xf32>
    %cst_47 = arith.constant 1.000000e+00 : f32
    %214 = vector.broadcast %cst_47 : f32 to vector<2x64xf32>
    %215 = arith.addf %214, %213 : vector<2x64xf32>
    %216 = arith.divf %214, %215 : vector<2x64xf32>
    %217 = vector.extract_strided_slice %206 {offsets = [0, 64], sizes = [2, 64], strides = [1, 1]} : vector<2x192xf32> to vector<2x64xf32>
    %218 = vector.extract_strided_slice %208 {offsets = [0, 64], sizes = [2, 64], strides = [1, 1]} : vector<2x192xf32> to vector<2x64xf32>
    %219 = arith.addf %217, %218 : vector<2x64xf32>
    %220 = arith.negf %219 : vector<2x64xf32>
    %221 = math.exp %220 : vector<2x64xf32>
    %cst_48 = arith.constant 1.000000e+00 : f32
    %222 = vector.broadcast %cst_48 : f32 to vector<2x64xf32>
    %223 = arith.addf %222, %221 : vector<2x64xf32>
    %224 = arith.divf %222, %223 : vector<2x64xf32>
    %225 = vector.extract_strided_slice %206 {offsets = [0, 128], sizes = [2, 64], strides = [1, 1]} : vector<2x192xf32> to vector<2x64xf32>
    %226 = vector.extract_strided_slice %208 {offsets = [0, 128], sizes = [2, 64], strides = [1, 1]} : vector<2x192xf32> to vector<2x64xf32>
    %227 = arith.addf %226, %14 : vector<2x64xf32>
    %228 = arith.mulf %216, %227 : vector<2x64xf32>
    %229 = arith.addf %225, %228 : vector<2x64xf32>
    %230 = math.tanh %229 : vector<2x64xf32>
    %cst_49 = arith.constant 1.000000e+00 : f32
    %231 = vector.broadcast %cst_49 : f32 to vector<2x64xf32>
    %232 = arith.subf %231, %224 : vector<2x64xf32>
    %233 = arith.mulf %232, %230 : vector<2x64xf32>
    %234 = arith.mulf %224, %173 : vector<2x64xf32>
    %235 = arith.addf %233, %234 : vector<2x64xf32>
    %236 = arith.truncf %235 : vector<2x64xf32> to vector<2x64xbf16>
    %cst_50 = arith.constant dense<0.000000e+00> : vector<2x192xf32>
    %237 = tpu.matmul %236, %7, %cst_50 {dimension_numbers = #tpu.dot_dimension_numbers<[1], [0], [0], [1], [0, 0, 1, 1], [], []>} : vector<2x64xbf16>, vector<64x192xbf16>, vector<2x192xf32> -> vector<2x192xf32>
    %238 = arith.addf %237, %11 : vector<2x192xf32>
    %239 = arith.truncf %205 : vector<2x64xf32> to vector<2x64xbf16>
    %cst_51 = arith.constant dense<0.000000e+00> : vector<2x192xf32>
    %240 = tpu.matmul %239, %8, %cst_51 {dimension_numbers = #tpu.dot_dimension_numbers<[1], [0], [0], [1], [0, 0, 1, 1], [], []>} : vector<2x64xbf16>, vector<64x192xbf16>, vector<2x192xf32> -> vector<2x192xf32>
    %241 = vector.extract_strided_slice %238 {offsets = [0, 0], sizes = [2, 64], strides = [1, 1]} : vector<2x192xf32> to vector<2x64xf32>
    %242 = vector.extract_strided_slice %240 {offsets = [0, 0], sizes = [2, 64], strides = [1, 1]} : vector<2x192xf32> to vector<2x64xf32>
    %243 = arith.addf %241, %242 : vector<2x64xf32>
    %244 = arith.negf %243 : vector<2x64xf32>
    %245 = math.exp %244 : vector<2x64xf32>
    %cst_52 = arith.constant 1.000000e+00 : f32
    %246 = vector.broadcast %cst_52 : f32 to vector<2x64xf32>
    %247 = arith.addf %246, %245 : vector<2x64xf32>
    %248 = arith.divf %246, %247 : vector<2x64xf32>
    %249 = vector.extract_strided_slice %238 {offsets = [0, 64], sizes = [2, 64], strides = [1, 1]} : vector<2x192xf32> to vector<2x64xf32>
    %250 = vector.extract_strided_slice %240 {offsets = [0, 64], sizes = [2, 64], strides = [1, 1]} : vector<2x192xf32> to vector<2x64xf32>
    %251 = arith.addf %249, %250 : vector<2x64xf32>
    %252 = arith.negf %251 : vector<2x64xf32>
    %253 = math.exp %252 : vector<2x64xf32>
    %cst_53 = arith.constant 1.000000e+00 : f32
    %254 = vector.broadcast %cst_53 : f32 to vector<2x64xf32>
    %255 = arith.addf %254, %253 : vector<2x64xf32>
    %256 = arith.divf %254, %255 : vector<2x64xf32>
    %257 = vector.extract_strided_slice %238 {offsets = [0, 128], sizes = [2, 64], strides = [1, 1]} : vector<2x192xf32> to vector<2x64xf32>
    %258 = vector.extract_strided_slice %240 {offsets = [0, 128], sizes = [2, 64], strides = [1, 1]} : vector<2x192xf32> to vector<2x64xf32>
    %259 = arith.addf %258, %17 : vector<2x64xf32>
    %260 = arith.mulf %248, %259 : vector<2x64xf32>
    %261 = arith.addf %257, %260 : vector<2x64xf32>
    %262 = math.tanh %261 : vector<2x64xf32>
    %cst_54 = arith.constant 1.000000e+00 : f32
    %263 = vector.broadcast %cst_54 : f32 to vector<2x64xf32>
    %264 = arith.subf %263, %256 : vector<2x64xf32>
    %265 = arith.mulf %264, %262 : vector<2x64xf32>
    %266 = arith.mulf %256, %205 : vector<2x64xf32>
    %267 = arith.addf %265, %266 : vector<2x64xf32>
    %268 = vector.extract_strided_slice %5 {offsets = [8, 0], sizes = [2, 192], strides = [1, 1]} : vector<16x192xf32> to vector<2x192xf32>
    %269 = arith.truncf %235 : vector<2x64xf32> to vector<2x64xbf16>
    %cst_55 = arith.constant dense<0.000000e+00> : vector<2x192xf32>
    %270 = tpu.matmul %269, %6, %cst_55 {dimension_numbers = #tpu.dot_dimension_numbers<[1], [0], [0], [1], [0, 0, 1, 1], [], []>} : vector<2x64xbf16>, vector<64x192xbf16>, vector<2x192xf32> -> vector<2x192xf32>
    %271 = vector.extract_strided_slice %268 {offsets = [0, 0], sizes = [2, 64], strides = [1, 1]} : vector<2x192xf32> to vector<2x64xf32>
    %272 = vector.extract_strided_slice %270 {offsets = [0, 0], sizes = [2, 64], strides = [1, 1]} : vector<2x192xf32> to vector<2x64xf32>
    %273 = arith.addf %271, %272 : vector<2x64xf32>
    %274 = arith.negf %273 : vector<2x64xf32>
    %275 = math.exp %274 : vector<2x64xf32>
    %cst_56 = arith.constant 1.000000e+00 : f32
    %276 = vector.broadcast %cst_56 : f32 to vector<2x64xf32>
    %277 = arith.addf %276, %275 : vector<2x64xf32>
    %278 = arith.divf %276, %277 : vector<2x64xf32>
    %279 = vector.extract_strided_slice %268 {offsets = [0, 64], sizes = [2, 64], strides = [1, 1]} : vector<2x192xf32> to vector<2x64xf32>
    %280 = vector.extract_strided_slice %270 {offsets = [0, 64], sizes = [2, 64], strides = [1, 1]} : vector<2x192xf32> to vector<2x64xf32>
    %281 = arith.addf %279, %280 : vector<2x64xf32>
    %282 = arith.negf %281 : vector<2x64xf32>
    %283 = math.exp %282 : vector<2x64xf32>
    %cst_57 = arith.constant 1.000000e+00 : f32
    %284 = vector.broadcast %cst_57 : f32 to vector<2x64xf32>
    %285 = arith.addf %284, %283 : vector<2x64xf32>
    %286 = arith.divf %284, %285 : vector<2x64xf32>
    %287 = vector.extract_strided_slice %268 {offsets = [0, 128], sizes = [2, 64], strides = [1, 1]} : vector<2x192xf32> to vector<2x64xf32>
    %288 = vector.extract_strided_slice %270 {offsets = [0, 128], sizes = [2, 64], strides = [1, 1]} : vector<2x192xf32> to vector<2x64xf32>
    %289 = arith.addf %288, %14 : vector<2x64xf32>
    %290 = arith.mulf %278, %289 : vector<2x64xf32>
    %291 = arith.addf %287, %290 : vector<2x64xf32>
    %292 = math.tanh %291 : vector<2x64xf32>
    %cst_58 = arith.constant 1.000000e+00 : f32
    %293 = vector.broadcast %cst_58 : f32 to vector<2x64xf32>
    %294 = arith.subf %293, %286 : vector<2x64xf32>
    %295 = arith.mulf %294, %292 : vector<2x64xf32>
    %296 = arith.mulf %286, %235 : vector<2x64xf32>
    %297 = arith.addf %295, %296 : vector<2x64xf32>
    %298 = arith.truncf %297 : vector<2x64xf32> to vector<2x64xbf16>
    %cst_59 = arith.constant dense<0.000000e+00> : vector<2x192xf32>
    %299 = tpu.matmul %298, %7, %cst_59 {dimension_numbers = #tpu.dot_dimension_numbers<[1], [0], [0], [1], [0, 0, 1, 1], [], []>} : vector<2x64xbf16>, vector<64x192xbf16>, vector<2x192xf32> -> vector<2x192xf32>
    %300 = arith.addf %299, %11 : vector<2x192xf32>
    %301 = arith.truncf %267 : vector<2x64xf32> to vector<2x64xbf16>
    %cst_60 = arith.constant dense<0.000000e+00> : vector<2x192xf32>
    %302 = tpu.matmul %301, %8, %cst_60 {dimension_numbers = #tpu.dot_dimension_numbers<[1], [0], [0], [1], [0, 0, 1, 1], [], []>} : vector<2x64xbf16>, vector<64x192xbf16>, vector<2x192xf32> -> vector<2x192xf32>
    %303 = vector.extract_strided_slice %300 {offsets = [0, 0], sizes = [2, 64], strides = [1, 1]} : vector<2x192xf32> to vector<2x64xf32>
    %304 = vector.extract_strided_slice %302 {offsets = [0, 0], sizes = [2, 64], strides = [1, 1]} : vector<2x192xf32> to vector<2x64xf32>
    %305 = arith.addf %303, %304 : vector<2x64xf32>
    %306 = arith.negf %305 : vector<2x64xf32>
    %307 = math.exp %306 : vector<2x64xf32>
    %cst_61 = arith.constant 1.000000e+00 : f32
    %308 = vector.broadcast %cst_61 : f32 to vector<2x64xf32>
    %309 = arith.addf %308, %307 : vector<2x64xf32>
    %310 = arith.divf %308, %309 : vector<2x64xf32>
    %311 = vector.extract_strided_slice %300 {offsets = [0, 64], sizes = [2, 64], strides = [1, 1]} : vector<2x192xf32> to vector<2x64xf32>
    %312 = vector.extract_strided_slice %302 {offsets = [0, 64], sizes = [2, 64], strides = [1, 1]} : vector<2x192xf32> to vector<2x64xf32>
    %313 = arith.addf %311, %312 : vector<2x64xf32>
    %314 = arith.negf %313 : vector<2x64xf32>
    %315 = math.exp %314 : vector<2x64xf32>
    %cst_62 = arith.constant 1.000000e+00 : f32
    %316 = vector.broadcast %cst_62 : f32 to vector<2x64xf32>
    %317 = arith.addf %316, %315 : vector<2x64xf32>
    %318 = arith.divf %316, %317 : vector<2x64xf32>
    %319 = vector.extract_strided_slice %300 {offsets = [0, 128], sizes = [2, 64], strides = [1, 1]} : vector<2x192xf32> to vector<2x64xf32>
    %320 = vector.extract_strided_slice %302 {offsets = [0, 128], sizes = [2, 64], strides = [1, 1]} : vector<2x192xf32> to vector<2x64xf32>
    %321 = arith.addf %320, %17 : vector<2x64xf32>
    %322 = arith.mulf %310, %321 : vector<2x64xf32>
    %323 = arith.addf %319, %322 : vector<2x64xf32>
    %324 = math.tanh %323 : vector<2x64xf32>
    %cst_63 = arith.constant 1.000000e+00 : f32
    %325 = vector.broadcast %cst_63 : f32 to vector<2x64xf32>
    %326 = arith.subf %325, %318 : vector<2x64xf32>
    %327 = arith.mulf %326, %324 : vector<2x64xf32>
    %328 = arith.mulf %318, %267 : vector<2x64xf32>
    %329 = arith.addf %327, %328 : vector<2x64xf32>
    %330 = vector.extract_strided_slice %5 {offsets = [10, 0], sizes = [2, 192], strides = [1, 1]} : vector<16x192xf32> to vector<2x192xf32>
    %331 = arith.truncf %297 : vector<2x64xf32> to vector<2x64xbf16>
    %cst_64 = arith.constant dense<0.000000e+00> : vector<2x192xf32>
    %332 = tpu.matmul %331, %6, %cst_64 {dimension_numbers = #tpu.dot_dimension_numbers<[1], [0], [0], [1], [0, 0, 1, 1], [], []>} : vector<2x64xbf16>, vector<64x192xbf16>, vector<2x192xf32> -> vector<2x192xf32>
    %333 = vector.extract_strided_slice %330 {offsets = [0, 0], sizes = [2, 64], strides = [1, 1]} : vector<2x192xf32> to vector<2x64xf32>
    %334 = vector.extract_strided_slice %332 {offsets = [0, 0], sizes = [2, 64], strides = [1, 1]} : vector<2x192xf32> to vector<2x64xf32>
    %335 = arith.addf %333, %334 : vector<2x64xf32>
    %336 = arith.negf %335 : vector<2x64xf32>
    %337 = math.exp %336 : vector<2x64xf32>
    %cst_65 = arith.constant 1.000000e+00 : f32
    %338 = vector.broadcast %cst_65 : f32 to vector<2x64xf32>
    %339 = arith.addf %338, %337 : vector<2x64xf32>
    %340 = arith.divf %338, %339 : vector<2x64xf32>
    %341 = vector.extract_strided_slice %330 {offsets = [0, 64], sizes = [2, 64], strides = [1, 1]} : vector<2x192xf32> to vector<2x64xf32>
    %342 = vector.extract_strided_slice %332 {offsets = [0, 64], sizes = [2, 64], strides = [1, 1]} : vector<2x192xf32> to vector<2x64xf32>
    %343 = arith.addf %341, %342 : vector<2x64xf32>
    %344 = arith.negf %343 : vector<2x64xf32>
    %345 = math.exp %344 : vector<2x64xf32>
    %cst_66 = arith.constant 1.000000e+00 : f32
    %346 = vector.broadcast %cst_66 : f32 to vector<2x64xf32>
    %347 = arith.addf %346, %345 : vector<2x64xf32>
    %348 = arith.divf %346, %347 : vector<2x64xf32>
    %349 = vector.extract_strided_slice %330 {offsets = [0, 128], sizes = [2, 64], strides = [1, 1]} : vector<2x192xf32> to vector<2x64xf32>
    %350 = vector.extract_strided_slice %332 {offsets = [0, 128], sizes = [2, 64], strides = [1, 1]} : vector<2x192xf32> to vector<2x64xf32>
    %351 = arith.addf %350, %14 : vector<2x64xf32>
    %352 = arith.mulf %340, %351 : vector<2x64xf32>
    %353 = arith.addf %349, %352 : vector<2x64xf32>
    %354 = math.tanh %353 : vector<2x64xf32>
    %cst_67 = arith.constant 1.000000e+00 : f32
    %355 = vector.broadcast %cst_67 : f32 to vector<2x64xf32>
    %356 = arith.subf %355, %348 : vector<2x64xf32>
    %357 = arith.mulf %356, %354 : vector<2x64xf32>
    %358 = arith.mulf %348, %297 : vector<2x64xf32>
    %359 = arith.addf %357, %358 : vector<2x64xf32>
    %360 = arith.truncf %359 : vector<2x64xf32> to vector<2x64xbf16>
    %cst_68 = arith.constant dense<0.000000e+00> : vector<2x192xf32>
    %361 = tpu.matmul %360, %7, %cst_68 {dimension_numbers = #tpu.dot_dimension_numbers<[1], [0], [0], [1], [0, 0, 1, 1], [], []>} : vector<2x64xbf16>, vector<64x192xbf16>, vector<2x192xf32> -> vector<2x192xf32>
    %362 = arith.addf %361, %11 : vector<2x192xf32>
    %363 = arith.truncf %329 : vector<2x64xf32> to vector<2x64xbf16>
    %cst_69 = arith.constant dense<0.000000e+00> : vector<2x192xf32>
    %364 = tpu.matmul %363, %8, %cst_69 {dimension_numbers = #tpu.dot_dimension_numbers<[1], [0], [0], [1], [0, 0, 1, 1], [], []>} : vector<2x64xbf16>, vector<64x192xbf16>, vector<2x192xf32> -> vector<2x192xf32>
    %365 = vector.extract_strided_slice %362 {offsets = [0, 0], sizes = [2, 64], strides = [1, 1]} : vector<2x192xf32> to vector<2x64xf32>
    %366 = vector.extract_strided_slice %364 {offsets = [0, 0], sizes = [2, 64], strides = [1, 1]} : vector<2x192xf32> to vector<2x64xf32>
    %367 = arith.addf %365, %366 : vector<2x64xf32>
    %368 = arith.negf %367 : vector<2x64xf32>
    %369 = math.exp %368 : vector<2x64xf32>
    %cst_70 = arith.constant 1.000000e+00 : f32
    %370 = vector.broadcast %cst_70 : f32 to vector<2x64xf32>
    %371 = arith.addf %370, %369 : vector<2x64xf32>
    %372 = arith.divf %370, %371 : vector<2x64xf32>
    %373 = vector.extract_strided_slice %362 {offsets = [0, 64], sizes = [2, 64], strides = [1, 1]} : vector<2x192xf32> to vector<2x64xf32>
    %374 = vector.extract_strided_slice %364 {offsets = [0, 64], sizes = [2, 64], strides = [1, 1]} : vector<2x192xf32> to vector<2x64xf32>
    %375 = arith.addf %373, %374 : vector<2x64xf32>
    %376 = arith.negf %375 : vector<2x64xf32>
    %377 = math.exp %376 : vector<2x64xf32>
    %cst_71 = arith.constant 1.000000e+00 : f32
    %378 = vector.broadcast %cst_71 : f32 to vector<2x64xf32>
    %379 = arith.addf %378, %377 : vector<2x64xf32>
    %380 = arith.divf %378, %379 : vector<2x64xf32>
    %381 = vector.extract_strided_slice %362 {offsets = [0, 128], sizes = [2, 64], strides = [1, 1]} : vector<2x192xf32> to vector<2x64xf32>
    %382 = vector.extract_strided_slice %364 {offsets = [0, 128], sizes = [2, 64], strides = [1, 1]} : vector<2x192xf32> to vector<2x64xf32>
    %383 = arith.addf %382, %17 : vector<2x64xf32>
    %384 = arith.mulf %372, %383 : vector<2x64xf32>
    %385 = arith.addf %381, %384 : vector<2x64xf32>
    %386 = math.tanh %385 : vector<2x64xf32>
    %cst_72 = arith.constant 1.000000e+00 : f32
    %387 = vector.broadcast %cst_72 : f32 to vector<2x64xf32>
    %388 = arith.subf %387, %380 : vector<2x64xf32>
    %389 = arith.mulf %388, %386 : vector<2x64xf32>
    %390 = arith.mulf %380, %329 : vector<2x64xf32>
    %391 = arith.addf %389, %390 : vector<2x64xf32>
    %392 = vector.extract_strided_slice %5 {offsets = [12, 0], sizes = [2, 192], strides = [1, 1]} : vector<16x192xf32> to vector<2x192xf32>
    %393 = arith.truncf %359 : vector<2x64xf32> to vector<2x64xbf16>
    %cst_73 = arith.constant dense<0.000000e+00> : vector<2x192xf32>
    %394 = tpu.matmul %393, %6, %cst_73 {dimension_numbers = #tpu.dot_dimension_numbers<[1], [0], [0], [1], [0, 0, 1, 1], [], []>} : vector<2x64xbf16>, vector<64x192xbf16>, vector<2x192xf32> -> vector<2x192xf32>
    %395 = vector.extract_strided_slice %392 {offsets = [0, 0], sizes = [2, 64], strides = [1, 1]} : vector<2x192xf32> to vector<2x64xf32>
    %396 = vector.extract_strided_slice %394 {offsets = [0, 0], sizes = [2, 64], strides = [1, 1]} : vector<2x192xf32> to vector<2x64xf32>
    %397 = arith.addf %395, %396 : vector<2x64xf32>
    %398 = arith.negf %397 : vector<2x64xf32>
    %399 = math.exp %398 : vector<2x64xf32>
    %cst_74 = arith.constant 1.000000e+00 : f32
    %400 = vector.broadcast %cst_74 : f32 to vector<2x64xf32>
    %401 = arith.addf %400, %399 : vector<2x64xf32>
    %402 = arith.divf %400, %401 : vector<2x64xf32>
    %403 = vector.extract_strided_slice %392 {offsets = [0, 64], sizes = [2, 64], strides = [1, 1]} : vector<2x192xf32> to vector<2x64xf32>
    %404 = vector.extract_strided_slice %394 {offsets = [0, 64], sizes = [2, 64], strides = [1, 1]} : vector<2x192xf32> to vector<2x64xf32>
    %405 = arith.addf %403, %404 : vector<2x64xf32>
    %406 = arith.negf %405 : vector<2x64xf32>
    %407 = math.exp %406 : vector<2x64xf32>
    %cst_75 = arith.constant 1.000000e+00 : f32
    %408 = vector.broadcast %cst_75 : f32 to vector<2x64xf32>
    %409 = arith.addf %408, %407 : vector<2x64xf32>
    %410 = arith.divf %408, %409 : vector<2x64xf32>
    %411 = vector.extract_strided_slice %392 {offsets = [0, 128], sizes = [2, 64], strides = [1, 1]} : vector<2x192xf32> to vector<2x64xf32>
    %412 = vector.extract_strided_slice %394 {offsets = [0, 128], sizes = [2, 64], strides = [1, 1]} : vector<2x192xf32> to vector<2x64xf32>
    %413 = arith.addf %412, %14 : vector<2x64xf32>
    %414 = arith.mulf %402, %413 : vector<2x64xf32>
    %415 = arith.addf %411, %414 : vector<2x64xf32>
    %416 = math.tanh %415 : vector<2x64xf32>
    %cst_76 = arith.constant 1.000000e+00 : f32
    %417 = vector.broadcast %cst_76 : f32 to vector<2x64xf32>
    %418 = arith.subf %417, %410 : vector<2x64xf32>
    %419 = arith.mulf %418, %416 : vector<2x64xf32>
    %420 = arith.mulf %410, %359 : vector<2x64xf32>
    %421 = arith.addf %419, %420 : vector<2x64xf32>
    %422 = arith.truncf %421 : vector<2x64xf32> to vector<2x64xbf16>
    %cst_77 = arith.constant dense<0.000000e+00> : vector<2x192xf32>
    %423 = tpu.matmul %422, %7, %cst_77 {dimension_numbers = #tpu.dot_dimension_numbers<[1], [0], [0], [1], [0, 0, 1, 1], [], []>} : vector<2x64xbf16>, vector<64x192xbf16>, vector<2x192xf32> -> vector<2x192xf32>
    %424 = arith.addf %423, %11 : vector<2x192xf32>
    %425 = arith.truncf %391 : vector<2x64xf32> to vector<2x64xbf16>
    %cst_78 = arith.constant dense<0.000000e+00> : vector<2x192xf32>
    %426 = tpu.matmul %425, %8, %cst_78 {dimension_numbers = #tpu.dot_dimension_numbers<[1], [0], [0], [1], [0, 0, 1, 1], [], []>} : vector<2x64xbf16>, vector<64x192xbf16>, vector<2x192xf32> -> vector<2x192xf32>
    %427 = vector.extract_strided_slice %424 {offsets = [0, 0], sizes = [2, 64], strides = [1, 1]} : vector<2x192xf32> to vector<2x64xf32>
    %428 = vector.extract_strided_slice %426 {offsets = [0, 0], sizes = [2, 64], strides = [1, 1]} : vector<2x192xf32> to vector<2x64xf32>
    %429 = arith.addf %427, %428 : vector<2x64xf32>
    %430 = arith.negf %429 : vector<2x64xf32>
    %431 = math.exp %430 : vector<2x64xf32>
    %cst_79 = arith.constant 1.000000e+00 : f32
    %432 = vector.broadcast %cst_79 : f32 to vector<2x64xf32>
    %433 = arith.addf %432, %431 : vector<2x64xf32>
    %434 = arith.divf %432, %433 : vector<2x64xf32>
    %435 = vector.extract_strided_slice %424 {offsets = [0, 64], sizes = [2, 64], strides = [1, 1]} : vector<2x192xf32> to vector<2x64xf32>
    %436 = vector.extract_strided_slice %426 {offsets = [0, 64], sizes = [2, 64], strides = [1, 1]} : vector<2x192xf32> to vector<2x64xf32>
    %437 = arith.addf %435, %436 : vector<2x64xf32>
    %438 = arith.negf %437 : vector<2x64xf32>
    %439 = math.exp %438 : vector<2x64xf32>
    %cst_80 = arith.constant 1.000000e+00 : f32
    %440 = vector.broadcast %cst_80 : f32 to vector<2x64xf32>
    %441 = arith.addf %440, %439 : vector<2x64xf32>
    %442 = arith.divf %440, %441 : vector<2x64xf32>
    %443 = vector.extract_strided_slice %424 {offsets = [0, 128], sizes = [2, 64], strides = [1, 1]} : vector<2x192xf32> to vector<2x64xf32>
    %444 = vector.extract_strided_slice %426 {offsets = [0, 128], sizes = [2, 64], strides = [1, 1]} : vector<2x192xf32> to vector<2x64xf32>
    %445 = arith.addf %444, %17 : vector<2x64xf32>
    %446 = arith.mulf %434, %445 : vector<2x64xf32>
    %447 = arith.addf %443, %446 : vector<2x64xf32>
    %448 = math.tanh %447 : vector<2x64xf32>
    %cst_81 = arith.constant 1.000000e+00 : f32
    %449 = vector.broadcast %cst_81 : f32 to vector<2x64xf32>
    %450 = arith.subf %449, %442 : vector<2x64xf32>
    %451 = arith.mulf %450, %448 : vector<2x64xf32>
    %452 = arith.mulf %442, %391 : vector<2x64xf32>
    %453 = arith.addf %451, %452 : vector<2x64xf32>
    %454 = vector.extract_strided_slice %5 {offsets = [14, 0], sizes = [2, 192], strides = [1, 1]} : vector<16x192xf32> to vector<2x192xf32>
    %455 = arith.truncf %421 : vector<2x64xf32> to vector<2x64xbf16>
    %cst_82 = arith.constant dense<0.000000e+00> : vector<2x192xf32>
    %456 = tpu.matmul %455, %6, %cst_82 {dimension_numbers = #tpu.dot_dimension_numbers<[1], [0], [0], [1], [0, 0, 1, 1], [], []>} : vector<2x64xbf16>, vector<64x192xbf16>, vector<2x192xf32> -> vector<2x192xf32>
    %457 = vector.extract_strided_slice %454 {offsets = [0, 0], sizes = [2, 64], strides = [1, 1]} : vector<2x192xf32> to vector<2x64xf32>
    %458 = vector.extract_strided_slice %456 {offsets = [0, 0], sizes = [2, 64], strides = [1, 1]} : vector<2x192xf32> to vector<2x64xf32>
    %459 = arith.addf %457, %458 : vector<2x64xf32>
    %460 = arith.negf %459 : vector<2x64xf32>
    %461 = math.exp %460 : vector<2x64xf32>
    %cst_83 = arith.constant 1.000000e+00 : f32
    %462 = vector.broadcast %cst_83 : f32 to vector<2x64xf32>
    %463 = arith.addf %462, %461 : vector<2x64xf32>
    %464 = arith.divf %462, %463 : vector<2x64xf32>
    %465 = vector.extract_strided_slice %454 {offsets = [0, 64], sizes = [2, 64], strides = [1, 1]} : vector<2x192xf32> to vector<2x64xf32>
    %466 = vector.extract_strided_slice %456 {offsets = [0, 64], sizes = [2, 64], strides = [1, 1]} : vector<2x192xf32> to vector<2x64xf32>
    %467 = arith.addf %465, %466 : vector<2x64xf32>
    %468 = arith.negf %467 : vector<2x64xf32>
    %469 = math.exp %468 : vector<2x64xf32>
    %cst_84 = arith.constant 1.000000e+00 : f32
    %470 = vector.broadcast %cst_84 : f32 to vector<2x64xf32>
    %471 = arith.addf %470, %469 : vector<2x64xf32>
    %472 = arith.divf %470, %471 : vector<2x64xf32>
    %473 = vector.extract_strided_slice %454 {offsets = [0, 128], sizes = [2, 64], strides = [1, 1]} : vector<2x192xf32> to vector<2x64xf32>
    %474 = vector.extract_strided_slice %456 {offsets = [0, 128], sizes = [2, 64], strides = [1, 1]} : vector<2x192xf32> to vector<2x64xf32>
    %475 = arith.addf %474, %14 : vector<2x64xf32>
    %476 = arith.mulf %464, %475 : vector<2x64xf32>
    %477 = arith.addf %473, %476 : vector<2x64xf32>
    %478 = math.tanh %477 : vector<2x64xf32>
    %cst_85 = arith.constant 1.000000e+00 : f32
    %479 = vector.broadcast %cst_85 : f32 to vector<2x64xf32>
    %480 = arith.subf %479, %472 : vector<2x64xf32>
    %481 = arith.mulf %480, %478 : vector<2x64xf32>
    %482 = arith.mulf %472, %421 : vector<2x64xf32>
    %483 = arith.addf %481, %482 : vector<2x64xf32>
    %484 = arith.truncf %483 : vector<2x64xf32> to vector<2x64xbf16>
    %cst_86 = arith.constant dense<0.000000e+00> : vector<2x192xf32>
    %485 = tpu.matmul %484, %7, %cst_86 {dimension_numbers = #tpu.dot_dimension_numbers<[1], [0], [0], [1], [0, 0, 1, 1], [], []>} : vector<2x64xbf16>, vector<64x192xbf16>, vector<2x192xf32> -> vector<2x192xf32>
    %486 = arith.addf %485, %11 : vector<2x192xf32>
    %487 = arith.truncf %453 : vector<2x64xf32> to vector<2x64xbf16>
    %cst_87 = arith.constant dense<0.000000e+00> : vector<2x192xf32>
    %488 = tpu.matmul %487, %8, %cst_87 {dimension_numbers = #tpu.dot_dimension_numbers<[1], [0], [0], [1], [0, 0, 1, 1], [], []>} : vector<2x64xbf16>, vector<64x192xbf16>, vector<2x192xf32> -> vector<2x192xf32>
    %489 = vector.extract_strided_slice %486 {offsets = [0, 0], sizes = [2, 64], strides = [1, 1]} : vector<2x192xf32> to vector<2x64xf32>
    %490 = vector.extract_strided_slice %488 {offsets = [0, 0], sizes = [2, 64], strides = [1, 1]} : vector<2x192xf32> to vector<2x64xf32>
    %491 = arith.addf %489, %490 : vector<2x64xf32>
    %492 = arith.negf %491 : vector<2x64xf32>
    %493 = math.exp %492 : vector<2x64xf32>
    %cst_88 = arith.constant 1.000000e+00 : f32
    %494 = vector.broadcast %cst_88 : f32 to vector<2x64xf32>
    %495 = arith.addf %494, %493 : vector<2x64xf32>
    %496 = arith.divf %494, %495 : vector<2x64xf32>
    %497 = vector.extract_strided_slice %486 {offsets = [0, 64], sizes = [2, 64], strides = [1, 1]} : vector<2x192xf32> to vector<2x64xf32>
    %498 = vector.extract_strided_slice %488 {offsets = [0, 64], sizes = [2, 64], strides = [1, 1]} : vector<2x192xf32> to vector<2x64xf32>
    %499 = arith.addf %497, %498 : vector<2x64xf32>
    %500 = arith.negf %499 : vector<2x64xf32>
    %501 = math.exp %500 : vector<2x64xf32>
    %cst_89 = arith.constant 1.000000e+00 : f32
    %502 = vector.broadcast %cst_89 : f32 to vector<2x64xf32>
    %503 = arith.addf %502, %501 : vector<2x64xf32>
    %504 = arith.divf %502, %503 : vector<2x64xf32>
    %505 = vector.extract_strided_slice %486 {offsets = [0, 128], sizes = [2, 64], strides = [1, 1]} : vector<2x192xf32> to vector<2x64xf32>
    %506 = vector.extract_strided_slice %488 {offsets = [0, 128], sizes = [2, 64], strides = [1, 1]} : vector<2x192xf32> to vector<2x64xf32>
    %507 = arith.addf %506, %17 : vector<2x64xf32>
    %508 = arith.mulf %496, %507 : vector<2x64xf32>
    %509 = arith.addf %505, %508 : vector<2x64xf32>
    %510 = math.tanh %509 : vector<2x64xf32>
    %cst_90 = arith.constant 1.000000e+00 : f32
    %511 = vector.broadcast %cst_90 : f32 to vector<2x64xf32>
    %512 = arith.subf %511, %504 : vector<2x64xf32>
    %513 = arith.mulf %512, %510 : vector<2x64xf32>
    %514 = arith.mulf %504, %453 : vector<2x64xf32>
    %515 = arith.addf %513, %514 : vector<2x64xf32>
    %c0_91 = arith.constant 0 : index
    %c0_92 = arith.constant 0 : index
    %516 = vector.load %arg9[%c0_91, %c0_92] : memref<1x64xf32, #tpu.memory_space<vmem>>, vector<1x64xf32>
    %517 = vector.broadcast %516 : vector<1x64xf32> to vector<2x64xf32>
    %518 = arith.mulf %515, %517 : vector<2x64xf32>
    %cst_93 = arith.constant dense<0.000000e+00> : vector<2xf32>
    %519 = vector.multi_reduction <add>, %518, %cst_93 [1] : vector<2x64xf32> to vector<2xf32>
    %520 = vector.shape_cast %519 : vector<2xf32> to vector<2x1xf32>
    %c0_94 = arith.constant 0 : index
    %c0_95 = arith.constant 0 : index
    %521 = vector.load %arg10[%c0_94, %c0_95] : memref<1x1xf32, #tpu.memory_space<vmem>>, vector<1x1xf32>
    %522 = vector.broadcast %521 : vector<1x1xf32> to vector<2x1xf32>
    %523 = arith.addf %520, %522 : vector<2x1xf32>
    %c0_96 = arith.constant 0 : index
    %c0_97 = arith.constant 0 : index
    %524 = vector.load %arg11[%c0_96, %c0_97] : memref<2x1xf32, #tpu.memory_space<vmem>>, vector<2x1xf32>
    tpu.vector_store %arg11[%c0_96, %c0_97], %523 {strides = array<i32>} : memref<2x1xf32, #tpu.memory_space<vmem>>, vector<2x1xf32>,
    return
  }
}

</mosaic_0001>

<llo_original>
// kernel: tpu_custom_call.1
$region0: #{tpu_custom_call.1}
  #allocation0 [shape = 'u32[]', space=smem, size = 0x4, offset = 0x4, fixed_abs, tag = 'smem constant byte address 0x4 - core index']
  #allocation1 [shape = 'u32[72,128]{1,0:T(1,128)}', space=vmem, size = 0x9000, scoped, tag = 'internal scratch']
  #allocation2 [shape = 'f32[1,1]{1,0:T(1,128)S(1)}', space=vmem, size = 0x200, scoped, tag = 'scoped memory for tpu_custom_call.1']
  %s0 = inlined_call_operand.vmem [shape: f32[16,1], index: 0, kind: input, shape index: {}]
  %s1 = inlined_call_operand.vmem [shape: f32[1,192], index: 1, kind: input, shape index: {}]
  %s2 = inlined_call_operand.hbm [shape: bf16[64,192], index: 2, kind: input, shape index: {}]
  %s3 = inlined_call_operand.vmem [shape: f32[1,192], index: 3, kind: input, shape index: {}]
  %s4 = inlined_call_operand.vmem [shape: f32[1,64], index: 4, kind: input, shape index: {}]
  %s5 = inlined_call_operand.hbm [shape: bf16[64,192], index: 5, kind: input, shape index: {}]
  %s6 = inlined_call_operand.hbm [shape: bf16[64,192], index: 6, kind: input, shape index: {}]
  %s7 = inlined_call_operand.vmem [shape: f32[1,192], index: 7, kind: input, shape index: {}]
  %s8 = inlined_call_operand.vmem [shape: f32[1,64], index: 8, kind: input, shape index: {}]
  %s9 = inlined_call_operand.vmem [shape: f32[1,64], index: 9, kind: input, shape index: {}]
  %s10 = inlined_call_operand.<no memory space> [shape: f32[1,1], index: 10, kind: input, shape index: {}]
  %s11 = inlined_call_operand.vmem [shape: f32[2,1], index: 11, kind: output, shape index: {}]
  %s12 = sld [smem:[#allocation0]]
  $region66: #{tpu_custom_call.1} parent=0
    _
  %s14 = ssub.s32 1, %s12
  %s15 = scalar_select 0, %s14, %s12
  %v16 = vstv %s10
  %17 = vst [vmem:[#allocation2] sm:$0x1] %v16
  $region1: #{tpu_custom_call.1} parent=0
    #allocation3 [shape = 'u8[32768]{0}', space=vmem, size = 0x8000, scoped, tag = 'input window, operand 2, single buffered']
    #allocation4 [shape = 's32[1]{0}', space=sflag, size = 0x4, scoped, tag = 'scoped memory for tpu_custom_call.1']
    #allocation5 [shape = 'u8[32768]{0}', space=vmem, size = 0x8000, scoped, tag = 'input window, operand 5, single buffered']
    #allocation6 [shape = 's32[1]{0}', space=sflag, size = 0x4, scoped, tag = 'scoped memory for tpu_custom_call.1']
    #allocation7 [shape = 'u8[32768]{0}', space=vmem, size = 0x8000, scoped, tag = 'input window, operand 6, single buffered']
    %18 = vsyncpa [#allocation4], 0
    %19 = vsyncpa [#allocation6], 0
    // Predicated region
    $region2: #{tpu_custom_call.1} parent=1 // pred_check
      _
    $region3: #{tpu_custom_call.1} parent=1 // pred_check_branch
      %21 = sbr.rel (0) target = $region5
    $region4: #{tpu_custom_call.1} parent=1 // pred_region
      _
    $region5: #{tpu_custom_call.1} parent=1 // pred_fallthru
      _
    // Predicated region
    $region6: #{tpu_custom_call.1} parent=1 // pred_check
      _
    $region7: #{tpu_custom_call.1} parent=1 // pred_check_branch
      %23 = sbr.rel (0) target = $region9
    $region8: #{tpu_custom_call.1} parent=1 // pred_region
      _
    $region9: #{tpu_custom_call.1} parent=1 // pred_fallthru
      _
    // Predicated region
    $region10: #{tpu_custom_call.1} parent=1 // pred_check
      _
    $region11: #{tpu_custom_call.1} parent=1 // pred_check_branch
      %25 = sbr.rel (0) target = $region13
    $region12: #{tpu_custom_call.1} parent=1 // pred_region
      %27 = vsyncadd [#allocation4], 0
      %s28 = sshll.u32 %s2, 4
      %s29 = int_to_ptr.hbm [resolvable:$true] %s28
      %s30 = sshll.u32 [#allocation3], 4
      %s31 = int_to_ptr.vmem [resolvable:$true] %s30
      %36 = dma.hbm_to_vmem [thread:$0]  %s29, 1024, %s31, [#allocation4], 128, 128, 8
    $region13: #{tpu_custom_call.1} parent=1 // pred_fallthru
      _
    // Predicated region
    $region14: #{tpu_custom_call.1} parent=1 // pred_check
      _
    $region15: #{tpu_custom_call.1} parent=1 // pred_check_branch
      %38 = sbr.rel (0) target = $region17
    $region16: #{tpu_custom_call.1} parent=1 // pred_region
      _
    $region17: #{tpu_custom_call.1} parent=1 // pred_fallthru
      _
    // Predicated region
    $region18: #{tpu_custom_call.1} parent=1 // pred_check
      _
    $region19: #{tpu_custom_call.1} parent=1 // pred_check_branch
      %40 = sbr.rel (0) target = $region21
    $region20: #{tpu_custom_call.1} parent=1 // pred_region
      _
    $region21: #{tpu_custom_call.1} parent=1 // pred_fallthru
      _
    // Predicated region
    $region22: #{tpu_custom_call.1} parent=1 // pred_check
      _
    $region23: #{tpu_custom_call.1} parent=1 // pred_check_branch
      %42 = sbr.rel (0) target = $region25
    $region24: #{tpu_custom_call.1} parent=1 // pred_region
      %44 = vsyncadd [#allocation6], 0
      %s45 = sshll.u32 %s5, 4
      %s46 = int_to_ptr.hbm [resolvable:$true] %s45
      %s47 = sshll.u32 [#allocation5], 4
      %s48 = int_to_ptr.vmem [resolvable:$true] %s47
      %53 = dma.hbm_to_vmem [thread:$0]  %s46, 1024, %s48, [#allocation6], 128, 128, 8
    $region25: #{tpu_custom_call.1} parent=1 // pred_fallthru
      _
    // Predicated region
    $region26: #{tpu_custom_call.1} parent=1 // pred_check
      _
    $region27: #{tpu_custom_call.1} parent=1 // pred_check_branch
      %55 = sbr.rel (0) target = $region29
    $region28: #{tpu_custom_call.1} parent=1 // pred_region
      %57 = vsyncadd [#allocation6], 0
      %s58 = sshll.u32 %s6, 4
      %s59 = int_to_ptr.hbm [resolvable:$true] %s58
      %s60 = sshll.u32 [#allocation7], 4
      %s61 = int_to_ptr.vmem [resolvable:$true] %s60
      %66 = dma.hbm_to_vmem [thread:$0]  %s59, 1024, %s61, [#allocation6], 128, 128, 8
    $region29: #{tpu_custom_call.1} parent=1 // pred_fallthru
      _
    // Predicated region
    $region30: #{tpu_custom_call.1} parent=1 // pred_check
      _
    $region31: #{tpu_custom_call.1} parent=1 // pred_check_branch
      %68 = sbr.rel (0) target = $region33
    $region32: #{tpu_custom_call.1} parent=1 // pred_region
      _
    $region33: #{tpu_custom_call.1} parent=1 // pred_fallthru
      _
    // Predicated region
    $region34: #{tpu_custom_call.1} parent=1 // pred_check
      _
    $region35: #{tpu_custom_call.1} parent=1 // pred_check_branch
      %70 = sbr.rel (0) target = $region37
    $region36: #{tpu_custom_call.1} parent=1 // pred_region
      _
    $region37: #{tpu_custom_call.1} parent=1 // pred_fallthru
      _
    // Predicated region
    $region38: #{tpu_custom_call.1} parent=1 // pred_check
      _
    $region39: #{tpu_custom_call.1} parent=1 // pred_check_branch
      %72 = sbr.rel (0) target = $region41
    $region40: #{tpu_custom_call.1} parent=1 // pred_region
      _
    $region41: #{tpu_custom_call.1} parent=1 // pred_fallthru
      _
    // Predicated region
    $region42: #{tpu_custom_call.1} parent=1 // pred_check
      _
    $region43: #{tpu_custom_call.1} parent=1 // pred_check_branch
      %74 = sbr.rel (0) target = $region45
    $region44: #{tpu_custom_call.1} parent=1 // pred_region
      _
    $region45: #{tpu_custom_call.1} parent=1 // pred_fallthru
      _
    // Predicated region
    $region46: #{tpu_custom_call.1} parent=1 // pred_check
      _
    $region47: #{tpu_custom_call.1} parent=1 // pred_check_branch
      %76 = sbr.rel (0) target = $region49
    $region48: #{tpu_custom_call.1} parent=1 // pred_region
      %78 = dma.done [#allocation4], 1024
    $region49: #{tpu_custom_call.1} parent=1 // pred_fallthru
      _
    // Predicated region
    $region50: #{tpu_custom_call.1} parent=1 // pred_check
      _
    $region51: #{tpu_custom_call.1} parent=1 // pred_check_branch
      %80 = sbr.rel (0) target = $region53
    $region52: #{tpu_custom_call.1} parent=1 // pred_region
      %82 = dma.done [#allocation6], 1024
    $region53: #{tpu_custom_call.1} parent=1 // pred_fallthru
      _
    // Predicated region
    $region54: #{tpu_custom_call.1} parent=1 // pred_check
      _
    $region55: #{tpu_custom_call.1} parent=1 // pred_check_branch
      %84 = sbr.rel (0) target = $region57
    $region56: #{tpu_custom_call.1} parent=1 // pred_region
      %86 = dma.done [#allocation6], 1024
    $region57: #{tpu_custom_call.1} parent=1 // pred_fallthru
      _
    %v88 = vld [vmem:[%s0] sm:$0xff]
    %v89 = vld [vmem:[%s0 + $0x8] sm:$0xff]
    %v90 = vld [vmem:[%s1] sm:$0x3]
    %v91 = vld [vmem:[%s3] sm:$0x3]
    %v93 = vperm.slane %v91, 0
    %v94 = vperm.slane %v91, 1
    %v98 = vperm.slane %v90, 0
    %v99 = vperm.slane %v90, 1
    %vm100 = vcmask 7168
    %v102 = vsel %vm100, %v88, 0
    %v105 = vsel %vm100, %v89, 0
    %vm107 = vcmask 1040384
    %v108 = vsel %vm107, %v98, 0
    %v110 = vsel %vm107, %v99, 0
    %112 = vmatpush.msra.mxu0 0.0
    %113 = vmatpush.msra.mxu0 0.0
    %114 = vmatpush.msra.mxu0 0.0
    %115 = vmatpush.msra.mxu0 0.0
    %116 = vmatpush.msra.mxu0 0.0
    %117 = vmatpush.msra.mxu0 0.0
    %118 = vmatpush.msra.mxu0 0.0
    %119 = vmatpush.msra.mxu0 0.0
    %120 = vmatpush.msra.mxu0 0.0
    %121 = vmatpush.msra.mxu0 0.0
    %122 = vmatpush.msra.mxu0 0.0
    %123 = vmatpush.msra.mxu0 0.0
    %124 = vmatpush.msra.mxu0 0.0
    %125 = vmatpush.msra.mxu0 0.0
    %126 = vmatpush.msra.mxu0 0.0
    %127 = vmatpush.msra.mxu0 %v108
    %128 = vmatmul.f32.gmra.mxu0 %v102
    %v129 = vpop.f32.mrf.mxu0
    %v130 = vadd.f32 %v93, %v129
    %131 = vmatmul.f32.gmra.mxu0 %v105
    %v132 = vpop.f32.mrf.mxu0
    %v133 = vadd.f32 %v93, %v132
    %134 = vdwg.mxu0
    %135 = vmatpush.msra.mxu0 0.0
    %136 = vmatpush.msra.mxu0 0.0
    %137 = vmatpush.msra.mxu0 0.0
    %138 = vmatpush.msra.mxu0 0.0
    %139 = vmatpush.msra.mxu0 0.0
    %140 = vmatpush.msra.mxu0 0.0
    %141 = vmatpush.msra.mxu0 0.0
    %142 = vmatpush.msra.mxu0 0.0
    %143 = vmatpush.msra.mxu0 0.0
    %144 = vmatpush.msra.mxu0 0.0
    %145 = vmatpush.msra.mxu0 0.0
    %146 = vmatpush.msra.mxu0 0.0
    %147 = vmatpush.msra.mxu0 0.0
    %148 = vmatpush.msra.mxu0 0.0
    %149 = vmatpush.msra.mxu0 0.0
    %150 = vmatpush.msra.mxu0 %v110
    %151 = vmatmul.f32.gmra.mxu0 %v102
    %v152 = vpop.f32.mrf.mxu0
    %v153 = vadd.f32 %v94, %v152
    %154 = vmatmul.f32.gmra.mxu0 %v105
    %v155 = vpop.f32.mrf.mxu0
    %v156 = vadd.f32 %v94, %v155
    %157 = vdwg.mxu0
    %v158 = vld [vmem:[#allocation3] sm:$0xff]
    %v159 = vld [vmem:[#allocation3 + $0x8] sm:$0xff]
    %v160 = vld [vmem:[#allocation3 + $0x10] sm:$0xff]
    %v161 = vld [vmem:[#allocation3 + $0x18] sm:$0xff]
    %v162 = vld [vmem:[#allocation3 + $0x20] sm:$0xff]
    %v163 = vld [vmem:[#allocation3 + $0x28] sm:$0xff]
    %v164 = vld [vmem:[#allocation3 + $0x30] sm:$0xff]
    %v165 = vld [vmem:[#allocation3 + $0x38] sm:$0xff]
    %v166 = vld [vmem:[#allocation5] sm:$0xff]
    %v167 = vld [vmem:[#allocation5 + $0x8] sm:$0xff]
    %v168 = vld [vmem:[#allocation5 + $0x10] sm:$0xff]
    %v169 = vld [vmem:[#allocation5 + $0x18] sm:$0xff]
    %v170 = vld [vmem:[#allocation5 + $0x20] sm:$0xff]
    %v171 = vld [vmem:[#allocation5 + $0x28] sm:$0xff]
    %v172 = vld [vmem:[#allocation5 + $0x30] sm:$0xff]
    %v173 = vld [vmem:[#allocation5 + $0x38] sm:$0xff]
    %v174 = vld [vmem:[#allocation7] sm:$0xff]
    %v175 = vld [vmem:[#allocation7 + $0x8] sm:$0xff]
    %v176 = vld [vmem:[#allocation7 + $0x10] sm:$0xff]
    %v177 = vld [vmem:[#allocation7 + $0x18] sm:$0xff]
    %v178 = vld [vmem:[#allocation7 + $0x20] sm:$0xff]
    %v179 = vld [vmem:[#allocation7 + $0x28] sm:$0xff]
    %v180 = vld [vmem:[#allocation7 + $0x30] sm:$0xff]
    %v181 = vld [vmem:[#allocation7 + $0x38] sm:$0xff]
    %v182 = vld [vmem:[%s7] sm:$0x3]
    %v184 = vperm.slane %v182, 0
    %v185 = vperm.slane %v182, 1
    %v188 = vld [vmem:[%s4] sm:$0x1]
    %v190 = vperm.slane %v188, 0
    %v192 = vld [vmem:[%s8] sm:$0x1]
    %v194 = vperm.slane %v192, 0
    %v204 = vunpack.c.l.b16 %v158
    %v205 = vunpack.c.h.b16 %v158
    %v206 = vunpack.c.l.b16 %v159
    %v207 = vunpack.c.h.b16 %v159
    %v208 = vunpack.c.l.b16 %v160
    %v209 = vunpack.c.h.b16 %v160
    %v210 = vunpack.c.l.b16 %v161
    %v211 = vunpack.c.h.b16 %v161
    %v212 = vunpack.c.l.b16 %v162
    %v213 = vunpack.c.h.b16 %v162
    %v214 = vunpack.c.l.b16 %v163
    %v215 = vunpack.c.h.b16 %v163
    %v216 = vunpack.c.l.b16 %v164
    %v217 = vunpack.c.h.b16 %v164
    %v218 = vunpack.c.l.b16 %v165
    %v219 = vunpack.c.h.b16 %v165
    %v220 = vpack.c.b16 %v206, %v204
    %v221 = vpack.c.b16 %v207, %v205
    %v222 = vpack.c.b16 %v210, %v208
    %v223 = vpack.c.b16 %v211, %v209
    %v224 = vpack.c.b16 %v214, %v212
    %v225 = vpack.c.b16 %v215, %v213
    %v226 = vpack.c.b16 %v218, %v216
    %v227 = vpack.c.b16 %v219, %v217
    %vm236 = vcmask 523264
    %v238 = vsel %vm236, 0, 0
    %240 = vmatpush.bf16.msra.mxu0 0
    %241 = vmatpush.bf16.msra.mxu0 0
    %242 = vmatpush.bf16.msra.mxu0 0
    %243 = vmatpush.bf16.msra.mxu0 0
    %244 = vmatpush.bf16.msra.mxu0 %v226
    %245 = vmatpush.bf16.msra.mxu0 %v224
    %246 = vmatpush.bf16.msra.mxu0 %v222
    %247 = vmatpush.bf16.msra.mxu0 %v220
    %248 = vmatmul.bf16.gmra.mxu0 %v238
    %v249 = vpop.f32.mrf.mxu0
    %v250 = vadd.f32 0.0, %v249
    %v251 = vpop.f32.mrf.mxu0
    %252 = vdwg.mxu0
    %253 = vmatpush.bf16.msra.mxu0 0
    %254 = vmatpush.bf16.msra.mxu0 0
    %255 = vmatpush.bf16.msra.mxu0 0
    %256 = vmatpush.bf16.msra.mxu0 0
    %257 = vmatpush.bf16.msra.mxu0 %v227
    %258 = vmatpush.bf16.msra.mxu0 %v225
    %259 = vmatpush.bf16.msra.mxu0 %v223
    %260 = vmatpush.bf16.msra.mxu0 %v221
    %261 = vmatmul.bf16.gmra.mxu0 %v238
    %v262 = vpop.f32.mrf.mxu0
    %v263 = vadd.f32 0.0, %v262
    %v264 = vpop.f32.mrf.mxu0
    %265 = vdwg.mxu0
    %v266 = vadd.f32 %v130, %v250
    %v267 = vxor.u32 %v266, 2147483648
    %v268 = vmul.f32 %v267, 1.442695
    %v269 = vpow.pop %v268
    %v270 = vadd.f32 %v269, 1.0
    %v271 = vrcp.pop %v270
    %v272 = vmul.f32 %v270, %v271
    %v273 = vsub.f32 1.0, %v272
    %v274 = vmul.f32 %v271, %v273
    %v275 = vadd.f32 %v271, %v274
    %vm276 = vweird.f32 %v270
    %vm277 = vweird.f32 %v271
    %vm278 = vmor %vm276, %vm277
    %v279 = vsel %vm278, %v271, %v275
    %v280 = vand.u32 2147483647, %v270
    %vm281 = vcmp.eq.f32.partialorder %v280, 8.507059e+37
    %v282 = vand.u32 %v270, 2147483648
    %v283 = vor.u32 1.1754944e-38, %v282
    %v284 = vsel %vm281, %v283, %v279
    %v285 = vmul.f32 1.0, %v284
    %v286 = vadd.f32 %v263, %v190
    %v287 = vmul.f32 %v285, %v286
    %v288 = vadd.f32 %v153, %v287
    %v289 = vtanh.pop %v288
    %v290 = vsub.f32 1.0, %v285
    %292 = vrot.lane.b32.xlu0 %v289, 64
    %v293 = vpop.permute.xlu0 %292
    %v295 = vmul.f32 %v290, %v293
    %v296 = vmul.f32 %v285, 0.0
    %v297 = vadd.f32 %v295, %v296
    %v298 = vpack.c.bf16 %v297, %v297
    %300 = vrot.lane.b32.xlu0 %v298, 64
    %v301 = vpop.permute.xlu0 %300
    %v310 = vunpack.c.l.b16 %v166
    %v311 = vunpack.c.h.b16 %v166
    %v312 = vunpack.c.l.b16 %v167
    %v313 = vunpack.c.h.b16 %v167
    %v314 = vunpack.c.l.b16 %v168
    %v315 = vunpack.c.h.b16 %v168
    %v316 = vunpack.c.l.b16 %v169
    %v317 = vunpack.c.h.b16 %v169
    %v318 = vunpack.c.l.b16 %v170
    %v319 = vunpack.c.h.b16 %v170
    %v320 = vunpack.c.l.b16 %v171
    %v321 = vunpack.c.h.b16 %v171
    %v322 = vunpack.c.l.b16 %v172
    %v323 = vunpack.c.h.b16 %v172
    %v324 = vunpack.c.l.b16 %v173
    %v325 = vunpack.c.h.b16 %v173
    %v326 = vpack.c.b16 %v312, %v310
    %v327 = vpack.c.b16 %v313, %v311
    %v328 = vpack.c.b16 %v316, %v314
    %v329 = vpack.c.b16 %v317, %v315
    %v330 = vpack.c.b16 %v320, %v318
    %v331 = vpack.c.b16 %v321, %v319
    %v332 = vpack.c.b16 %v324, %v322
    %v333 = vpack.c.b16 %v325, %v323
    %v343 = vsel %vm236, %v301, 0
    %345 = vmatpush.bf16.msra.mxu0 0
    %346 = vmatpush.bf16.msra.mxu0 0
    %347 = vmatpush.bf16.msra.mxu0 0
    %348 = vmatpush.bf16.msra.mxu0 0
    %349 = vmatpush.bf16.msra.mxu0 %v332
    %350 = vmatpush.bf16.msra.mxu0 %v330
    %351 = vmatpush.bf16.msra.mxu0 %v328
    %352 = vmatpush.bf16.msra.mxu0 %v326
    %353 = vmatmul.bf16.gmra.mxu0 %v343
    %v354 = vpop.f32.mrf.mxu0
    %v355 = vadd.f32 %v184, %v354
    %v356 = vpop.f32.mrf.mxu0
    %357 = vdwg.mxu0
    %358 = vmatpush.bf16.msra.mxu0 0
    %359 = vmatpush.bf16.msra.mxu0 0
    %360 = vmatpush.bf16.msra.mxu0 0
    %361 = vmatpush.bf16.msra.mxu0 0
    %362 = vmatpush.bf16.msra.mxu0 %v333
    %363 = vmatpush.bf16.msra.mxu0 %v331
    %364 = vmatpush.bf16.msra.mxu0 %v329
    %365 = vmatpush.bf16.msra.mxu0 %v327
    %366 = vmatmul.bf16.gmra.mxu0 %v343
    %v367 = vpop.f32.mrf.mxu0
    %v368 = vadd.f32 %v185, %v367
    %v369 = vpop.f32.mrf.mxu0
    %370 = vdwg.mxu0
    %v379 = vunpack.c.l.b16 %v174
    %v380 = vunpack.c.h.b16 %v174
    %v381 = vunpack.c.l.b16 %v175
    %v382 = vunpack.c.h.b16 %v175
    %v383 = vunpack.c.l.b16 %v176
    %v384 = vunpack.c.h.b16 %v176
    %v385 = vunpack.c.l.b16 %v177
    %v386 = vunpack.c.h.b16 %v177
    %v387 = vunpack.c.l.b16 %v178
    %v388 = vunpack.c.h.b16 %v178
    %v389 = vunpack.c.l.b16 %v179
    %v390 = vunpack.c.h.b16 %v179
    %v391 = vunpack.c.l.b16 %v180
    %v392 = vunpack.c.h.b16 %v180
    %v393 = vunpack.c.l.b16 %v181
    %v394 = vunpack.c.h.b16 %v181
    %v395 = vpack.c.b16 %v381, %v379
    %v396 = vpack.c.b16 %v382, %v380
    %v397 = vpack.c.b16 %v385, %v383
    %v398 = vpack.c.b16 %v386, %v384
    %v399 = vpack.c.b16 %v389, %v387
    %v400 = vpack.c.b16 %v390, %v388
    %v401 = vpack.c.b16 %v393, %v391
    %v402 = vpack.c.b16 %v394, %v392
    %411 = vmatpush.bf16.msra.mxu0 0
    %412 = vmatpush.bf16.msra.mxu0 0
    %413 = vmatpush.bf16.msra.mxu0 0
    %414 = vmatpush.bf16.msra.mxu0 0
    %415 = vmatpush.bf16.msra.mxu0 %v401
    %416 = vmatpush.bf16.msra.mxu0 %v399
    %417 = vmatpush.bf16.msra.mxu0 %v397
    %418 = vmatpush.bf16.msra.mxu0 %v395
    %419 = vmatmul.bf16.gmra.mxu0 %v238
    %v420 = vpop.f32.mrf.mxu0
    %v421 = vadd.f32 0.0, %v420
    %v422 = vpop.f32.mrf.mxu0
    %423 = vdwg.mxu0
    %424 = vmatpush.bf16.msra.mxu0 0
    %425 = vmatpush.bf16.msra.mxu0 0
    %426 = vmatpush.bf16.msra.mxu0 0
    %427 = vmatpush.bf16.msra.mxu0 0
    %428 = vmatpush.bf16.msra.mxu0 %v402
    %429 = vmatpush.bf16.msra.mxu0 %v400
    %430 = vmatpush.bf16.msra.mxu0 %v398
    %431 = vmatpush.bf16.msra.mxu0 %v396
    %432 = vmatmul.bf16.gmra.mxu0 %v238
    %v433 = vpop.f32.mrf.mxu0
    %v434 = vadd.f32 0.0, %v433
    %v435 = vpop.f32.mrf.mxu0
    %436 = vdwg.mxu0
    %v437 = vadd.f32 %v355, %v421
    %v438 = vxor.u32 %v437, 2147483648
    %v439 = vmul.f32 %v438, 1.442695
    %v440 = vpow.pop %v439
    %v441 = vadd.f32 %v440, 1.0
    %v442 = vrcp.pop %v441
    %v443 = vmul.f32 %v441, %v442
    %v444 = vsub.f32 1.0, %v443
    %v445 = vmul.f32 %v442, %v444
    %v446 = vadd.f32 %v442, %v445
    %vm447 = vweird.f32 %v441
    %vm448 = vweird.f32 %v442
    %vm449 = vmor %vm447, %vm448
    %v450 = vsel %vm449, %v442, %v446
    %v451 = vand.u32 2147483647, %v441
    %vm452 = vcmp.eq.f32.partialorder %v451, 8.507059e+37
    %v453 = vand.u32 %v441, 2147483648
    %v454 = vor.u32 1.1754944e-38, %v453
    %v455 = vsel %vm452, %v454, %v450
    %v456 = vmul.f32 1.0, %v455
    %v457 = vadd.f32 %v434, %v194
    %v458 = vmul.f32 %v456, %v457
    %v459 = vadd.f32 %v368, %v458
    %v460 = vtanh.pop %v459
    %v461 = vsub.f32 1.0, %v456
    %463 = vrot.lane.b32.xlu0 %v460, 64
    %v464 = vpop.permute.xlu0 %463
    %v466 = vmul.f32 %v461, %v464
    %v467 = vmul.f32 %v456, 0.0
    %v468 = vadd.f32 %v466, %v467
    %469 = vmatpush.bf16.msra.mxu0 0
    %470 = vmatpush.bf16.msra.mxu0 0
    %471 = vmatpush.bf16.msra.mxu0 0
    %472 = vmatpush.bf16.msra.mxu0 0
    %473 = vmatpush.bf16.msra.mxu0 %v226
    %474 = vmatpush.bf16.msra.mxu0 %v224
    %475 = vmatpush.bf16.msra.mxu0 %v222
    %476 = vmatpush.bf16.msra.mxu0 %v220
    %477 = vmatmul.bf16.gmra.mxu0 %v343
    %v478 = vpop.f32.mrf.mxu0
    %v479 = vadd.f32 0.0, %v478
    %v480 = vpop.f32.mrf.mxu0
    %481 = vdwg.mxu0
    %482 = vmatpush.bf16.msra.mxu0 0
    %483 = vmatpush.bf16.msra.mxu0 0
    %484 = vmatpush.bf16.msra.mxu0 0
    %485 = vmatpush.bf16.msra.mxu0 0
    %486 = vmatpush.bf16.msra.mxu0 %v227
    %487 = vmatpush.bf16.msra.mxu0 %v225
    %488 = vmatpush.bf16.msra.mxu0 %v223
    %489 = vmatpush.bf16.msra.mxu0 %v221
    %490 = vmatmul.bf16.gmra.mxu0 %v343
    %v491 = vpop.f32.mrf.mxu0
    %v492 = vadd.f32 0.0, %v491
    %v493 = vpop.f32.mrf.mxu0
    %494 = vdwg.mxu0
    %v496 = vrot.slane %v479, 6
    %v498 = vadd.f32 %v130, %v496
    %v499 = vxor.u32 %v498, 2147483648
    %v500 = vmul.f32 %v499, 1.442695
    %v501 = vpow.pop %v500
    %v502 = vadd.f32 %v501, 1.0
    %v503 = vrcp.pop %v502
    %v504 = vmul.f32 %v502, %v503
    %v505 = vsub.f32 1.0, %v504
    %v506 = vmul.f32 %v503, %v505
    %v507 = vadd.f32 %v503, %v506
    %vm508 = vweird.f32 %v502
    %vm509 = vweird.f32 %v503
    %vm510 = vmor %vm508, %vm509
    %v511 = vsel %vm510, %v503, %v507
    %v512 = vand.u32 2147483647, %v502
    %vm513 = vcmp.eq.f32.partialorder %v512, 8.507059e+37
    %v514 = vand.u32 %v502, 2147483648
    %v515 = vor.u32 1.1754944e-38, %v514
    %v516 = vsel %vm513, %v515, %v511
    %v517 = vmul.f32 1.0, %v516
    %v518 = vadd.f32 %v492, %v190
    %v520 = vrot.slane %v518, 6
    %v522 = vmul.f32 %v517, %v520
    %v523 = vadd.f32 %v153, %v522
    %v524 = vtanh.pop %v523
    %v525 = vsub.f32 1.0, %v517
    %527 = vrot.lane.b32.xlu0 %v524, 64
    %v528 = vpop.permute.xlu0 %527
    %v530 = vmul.f32 %v525, %v528
    %v532 = vrot.slane %v297, 6
    %v534 = vmul.f32 %v517, %v532
    %v535 = vadd.f32 %v530, %v534
    %v536 = vpack.c.bf16 %v535, %v535
    %v538 = vrot.slane %v536, 1
    %539 = vrot.lane.b32.xlu0 %v538, 64
    %v540 = vpop.permute.xlu0 %539
    %v542 = vsel %vm236, %v540, 0
    %544 = vmatpush.bf16.msra.mxu0 0
    %545 = vmatpush.bf16.msra.mxu0 0
    %546 = vmatpush.bf16.msra.mxu0 0
    %547 = vmatpush.bf16.msra.mxu0 0
    %548 = vmatpush.bf16.msra.mxu0 %v332
    %549 = vmatpush.bf16.msra.mxu0 %v330
    %550 = vmatpush.bf16.msra.mxu0 %v328
    %551 = vmatpush.bf16.msra.mxu0 %v326
    %552 = vmatmul.bf16.gmra.mxu0 %v542
    %v553 = vpop.f32.mrf.mxu0
    %v554 = vadd.f32 %v184, %v553
    %v555 = vpop.f32.mrf.mxu0
    %556 = vdwg.mxu0
    %557 = vmatpush.bf16.msra.mxu0 0
    %558 = vmatpush.bf16.msra.mxu0 0
    %559 = vmatpush.bf16.msra.mxu0 0
    %560 = vmatpush.bf16.msra.mxu0 0
    %561 = vmatpush.bf16.msra.mxu0 %v333
    %562 = vmatpush.bf16.msra.mxu0 %v331
    %563 = vmatpush.bf16.msra.mxu0 %v329
    %564 = vmatpush.bf16.msra.mxu0 %v327
    %565 = vmatmul.bf16.gmra.mxu0 %v542
    %v566 = vpop.f32.mrf.mxu0
    %v567 = vadd.f32 %v185, %v566
    %v568 = vpop.f32.mrf.mxu0
    %569 = vdwg.mxu0
    %v570 = vpack.c.bf16 %v468, %v468
    %572 = vrot.lane.b32.xlu0 %v570, 64
    %v573 = vpop.permute.xlu0 %572
    %v575 = vsel %vm236, %v573, 0
    %577 = vmatpush.bf16.msra.mxu0 0
    %578 = vmatpush.bf16.msra.mxu0 0
    %579 = vmatpush.bf16.msra.mxu0 0
    %580 = vmatpush.bf16.msra.mxu0 0
    %581 = vmatpush.bf16.msra.mxu0 %v401
    %582 = vmatpush.bf16.msra.mxu0 %v399
    %583 = vmatpush.bf16.msra.mxu0 %v397
    %584 = vmatpush.bf16.msra.mxu0 %v395
    %585 = vmatmul.bf16.gmra.mxu0 %v575
    %v586 = vpop.f32.mrf.mxu0
    %v587 = vadd.f32 0.0, %v586
    %v588 = vpop.f32.mrf.mxu0
    %589 = vdwg.mxu0
    %590 = vmatpush.bf16.msra.mxu0 0
    %591 = vmatpush.bf16.msra.mxu0 0
    %592 = vmatpush.bf16.msra.mxu0 0
    %593 = vmatpush.bf16.msra.mxu0 0
    %594 = vmatpush.bf16.msra.mxu0 %v402
    %595 = vmatpush.bf16.msra.mxu0 %v400
    %596 = vmatpush.bf16.msra.mxu0 %v398
    %597 = vmatpush.bf16.msra.mxu0 %v396
    %598 = vmatmul.bf16.gmra.mxu0 %v575
    %v599 = vpop.f32.mrf.mxu0
    %v600 = vadd.f32 0.0, %v599
    %v601 = vpop.f32.mrf.mxu0
    %602 = vdwg.mxu0
    %v603 = vadd.f32 %v554, %v587
    %v604 = vxor.u32 %v603, 2147483648
    %v605 = vmul.f32 %v604, 1.442695
    %v606 = vpow.pop %v605
    %v607 = vadd.f32 %v606, 1.0
    %v608 = vrcp.pop %v607
    %v609 = vmul.f32 %v607, %v608
    %v610 = vsub.f32 1.0, %v609
    %v611 = vmul.f32 %v608, %v610
    %v612 = vadd.f32 %v608, %v611
    %vm613 = vweird.f32 %v607
    %vm614 = vweird.f32 %v608
    %vm615 = vmor %vm613, %vm614
    %v616 = vsel %vm615, %v608, %v612
    %v617 = vand.u32 2147483647, %v607
    %vm618 = vcmp.eq.f32.partialorder %v617, 8.507059e+37
    %v619 = vand.u32 %v607, 2147483648
    %v620 = vor.u32 1.1754944e-38, %v619
    %v621 = vsel %vm618, %v620, %v616
    %v622 = vmul.f32 1.0, %v621
    %v623 = vadd.f32 %v600, %v194
    %v624 = vmul.f32 %v622, %v623
    %v625 = vadd.f32 %v567, %v624
    %v626 = vtanh.pop %v625
    %v627 = vsub.f32 1.0, %v622
    %629 = vrot.lane.b32.xlu0 %v626, 64
    %v630 = vpop.permute.xlu0 %629
    %v632 = vmul.f32 %v627, %v630
    %v633 = vmul.f32 %v622, %v468
    %v634 = vadd.f32 %v632, %v633
    %635 = vmatpush.bf16.msra.mxu0 0
    %636 = vmatpush.bf16.msra.mxu0 0
    %637 = vmatpush.bf16.msra.mxu0 0
    %638 = vmatpush.bf16.msra.mxu0 0
    %639 = vmatpush.bf16.msra.mxu0 %v226
    %640 = vmatpush.bf16.msra.mxu0 %v224
    %641 = vmatpush.bf16.msra.mxu0 %v222
    %642 = vmatpush.bf16.msra.mxu0 %v220
    %643 = vmatmul.bf16.gmra.mxu0 %v542
    %v644 = vpop.f32.mrf.mxu0
    %v645 = vadd.f32 0.0, %v644
    %v646 = vpop.f32.mrf.mxu0
    %647 = vdwg.mxu0
    %648 = vmatpush.bf16.msra.mxu0 0
    %649 = vmatpush.bf16.msra.mxu0 0
    %650 = vmatpush.bf16.msra.mxu0 0
    %651 = vmatpush.bf16.msra.mxu0 0
    %652 = vmatpush.bf16.msra.mxu0 %v227
    %653 = vmatpush.bf16.msra.mxu0 %v225
    %654 = vmatpush.bf16.msra.mxu0 %v223
    %655 = vmatpush.bf16.msra.mxu0 %v221
    %656 = vmatmul.bf16.gmra.mxu0 %v542
    %v657 = vpop.f32.mrf.mxu0
    %v658 = vadd.f32 0.0, %v657
    %v659 = vpop.f32.mrf.mxu0
    %660 = vdwg.mxu0
    %v662 = vrot.slane %v645, 4
    %v664 = vadd.f32 %v130, %v662
    %v665 = vxor.u32 %v664, 2147483648
    %v666 = vmul.f32 %v665, 1.442695
    %v667 = vpow.pop %v666
    %v668 = vadd.f32 %v667, 1.0
    %v669 = vrcp.pop %v668
    %v670 = vmul.f32 %v668, %v669
    %v671 = vsub.f32 1.0, %v670
    %v672 = vmul.f32 %v669, %v671
    %v673 = vadd.f32 %v669, %v672
    %vm674 = vweird.f32 %v668
    %vm675 = vweird.f32 %v669
    %vm676 = vmor %vm674, %vm675
    %v677 = vsel %vm676, %v669, %v673
    %v678 = vand.u32 2147483647, %v668
    %vm679 = vcmp.eq.f32.partialorder %v678, 8.507059e+37
    %v680 = vand.u32 %v668, 2147483648
    %v681 = vor.u32 1.1754944e-38, %v680
    %v682 = vsel %vm679, %v681, %v677
    %v683 = vmul.f32 1.0, %v682
    %v684 = vadd.f32 %v658, %v190
    %v686 = vrot.slane %v684, 4
    %v688 = vmul.f32 %v683, %v686
    %v689 = vadd.f32 %v153, %v688
    %v690 = vtanh.pop %v689
    %v691 = vsub.f32 1.0, %v683
    %693 = vrot.lane.b32.xlu0 %v690, 64
    %v694 = vpop.permute.xlu0 %693
    %v696 = vmul.f32 %v691, %v694
    %v698 = vrot.slane %v535, 6
    %v700 = vmul.f32 %v683, %v698
    %v701 = vadd.f32 %v696, %v700
    %v702 = vpack.c.bf16 %v701, %v701
    %v704 = vrot.slane %v702, 2
    %705 = vrot.lane.b32.xlu0 %v704, 64
    %v706 = vpop.permute.xlu0 %705
    %v708 = vsel %vm236, %v706, 0
    %710 = vmatpush.bf16.msra.mxu0 0
    %711 = vmatpush.bf16.msra.mxu0 0
    %712 = vmatpush.bf16.msra.mxu0 0
    %713 = vmatpush.bf16.msra.mxu0 0
    %714 = vmatpush.bf16.msra.mxu0 %v332
    %715 = vmatpush.bf16.msra.mxu0 %v330
    %716 = vmatpush.bf16.msra.mxu0 %v328
    %717 = vmatpush.bf16.msra.mxu0 %v326
    %718 = vmatmul.bf16.gmra.mxu0 %v708
    %v719 = vpop.f32.mrf.mxu0
    %v720 = vadd.f32 %v184, %v719
    %v721 = vpop.f32.mrf.mxu0
    %722 = vdwg.mxu0
    %723 = vmatpush.bf16.msra.mxu0 0
    %724 = vmatpush.bf16.msra.mxu0 0
    %725 = vmatpush.bf16.msra.mxu0 0
    %726 = vmatpush.bf16.msra.mxu0 0
    %727 = vmatpush.bf16.msra.mxu0 %v333
    %728 = vmatpush.bf16.msra.mxu0 %v331
    %729 = vmatpush.bf16.msra.mxu0 %v329
    %730 = vmatpush.bf16.msra.mxu0 %v327
    %731 = vmatmul.bf16.gmra.mxu0 %v708
    %v732 = vpop.f32.mrf.mxu0
    %v733 = vadd.f32 %v185, %v732
    %v734 = vpop.f32.mrf.mxu0
    %735 = vdwg.mxu0
    %v736 = vpack.c.bf16 %v634, %v634
    %738 = vrot.lane.b32.xlu0 %v736, 64
    %v739 = vpop.permute.xlu0 %738
    %v741 = vsel %vm236, %v739, 0
    %743 = vmatpush.bf16.msra.mxu0 0
    %744 = vmatpush.bf16.msra.mxu0 0
    %745 = vmatpush.bf16.msra.mxu0 0
    %746 = vmatpush.bf16.msra.mxu0 0
    %747 = vmatpush.bf16.msra.mxu0 %v401
    %748 = vmatpush.bf16.msra.mxu0 %v399
    %749 = vmatpush.bf16.msra.mxu0 %v397
    %750 = vmatpush.bf16.msra.mxu0 %v395
    %751 = vmatmul.bf16.gmra.mxu0 %v741
    %v752 = vpop.f32.mrf.mxu0
    %v753 = vadd.f32 0.0, %v752
    %v754 = vpop.f32.mrf.mxu0
    %755 = vdwg.mxu0
    %756 = vmatpush.bf16.msra.mxu0 0
    %757 = vmatpush.bf16.msra.mxu0 0
    %758 = vmatpush.bf16.msra.mxu0 0
    %759 = vmatpush.bf16.msra.mxu0 0
    %760 = vmatpush.bf16.msra.mxu0 %v402
    %761 = vmatpush.bf16.msra.mxu0 %v400
    %762 = vmatpush.bf16.msra.mxu0 %v398
    %763 = vmatpush.bf16.msra.mxu0 %v396
    %764 = vmatmul.bf16.gmra.mxu0 %v741
    %v765 = vpop.f32.mrf.mxu0
    %v766 = vadd.f32 0.0, %v765
    %v767 = vpop.f32.mrf.mxu0
    %768 = vdwg.mxu0
    %v769 = vadd.f32 %v720, %v753
    %v770 = vxor.u32 %v769, 2147483648
    %v771 = vmul.f32 %v770, 1.442695
    %v772 = vpow.pop %v771
    %v773 = vadd.f32 %v772, 1.0
    %v774 = vrcp.pop %v773
    %v775 = vmul.f32 %v773, %v774
    %v776 = vsub.f32 1.0, %v775
    %v777 = vmul.f32 %v774, %v776
    %v778 = vadd.f32 %v774, %v777
    %vm779 = vweird.f32 %v773
    %vm780 = vweird.f32 %v774
    %vm781 = vmor %vm779, %vm780
    %v782 = vsel %vm781, %v774, %v778
    %v783 = vand.u32 2147483647, %v773
    %vm784 = vcmp.eq.f32.partialorder %v783, 8.507059e+37
    %v785 = vand.u32 %v773, 2147483648
    %v786 = vor.u32 1.1754944e-38, %v785
    %v787 = vsel %vm784, %v786, %v782
    %v788 = vmul.f32 1.0, %v787
    %v789 = vadd.f32 %v766, %v194
    %v790 = vmul.f32 %v788, %v789
    %v791 = vadd.f32 %v733, %v790
    %v792 = vtanh.pop %v791
    %v793 = vsub.f32 1.0, %v788
    %795 = vrot.lane.b32.xlu0 %v792, 64
    %v796 = vpop.permute.xlu0 %795
    %v798 = vmul.f32 %v793, %v796
    %v799 = vmul.f32 %v788, %v634
    %v800 = vadd.f32 %v798, %v799
    %801 = vmatpush.bf16.msra.mxu0 0
    %802 = vmatpush.bf16.msra.mxu0 0
    %803 = vmatpush.bf16.msra.mxu0 0
    %804 = vmatpush.bf16.msra.mxu0 0
    %805 = vmatpush.bf16.msra.mxu0 %v226
    %806 = vmatpush.bf16.msra.mxu0 %v224
    %807 = vmatpush.bf16.msra.mxu0 %v222
    %808 = vmatpush.bf16.msra.mxu0 %v220
    %809 = vmatmul.bf16.gmra.mxu0 %v708
    %v810 = vpop.f32.mrf.mxu0
    %v811 = vadd.f32 0.0, %v810
    %v812 = vpop.f32.mrf.mxu0
    %813 = vdwg.mxu0
    %814 = vmatpush.bf16.msra.mxu0 0
    %815 = vmatpush.bf16.msra.mxu0 0
    %816 = vmatpush.bf16.msra.mxu0 0
    %817 = vmatpush.bf16.msra.mxu0 0
    %818 = vmatpush.bf16.msra.mxu0 %v227
    %819 = vmatpush.bf16.msra.mxu0 %v225
    %820 = vmatpush.bf16.msra.mxu0 %v223
    %821 = vmatpush.bf16.msra.mxu0 %v221
    %822 = vmatmul.bf16.gmra.mxu0 %v708
    %v823 = vpop.f32.mrf.mxu0
    %v824 = vadd.f32 0.0, %v823
    %v825 = vpop.f32.mrf.mxu0
    %826 = vdwg.mxu0
    %v828 = vrot.slane %v811, 2
    %v830 = vadd.f32 %v130, %v828
    %v831 = vxor.u32 %v830, 2147483648
    %v832 = vmul.f32 %v831, 1.442695
    %v833 = vpow.pop %v832
    %v834 = vadd.f32 %v833, 1.0
    %v835 = vrcp.pop %v834
    %v836 = vmul.f32 %v834, %v835
    %v837 = vsub.f32 1.0, %v836
    %v838 = vmul.f32 %v835, %v837
    %v839 = vadd.f32 %v835, %v838
    %vm840 = vweird.f32 %v834
    %vm841 = vweird.f32 %v835
    %vm842 = vmor %vm840, %vm841
    %v843 = vsel %vm842, %v835, %v839
    %v844 = vand.u32 2147483647, %v834
    %vm845 = vcmp.eq.f32.partialorder %v844, 8.507059e+37
    %v846 = vand.u32 %v834, 2147483648
    %v847 = vor.u32 1.1754944e-38, %v846
    %v848 = vsel %vm845, %v847, %v843
    %v849 = vmul.f32 1.0, %v848
    %v850 = vadd.f32 %v824, %v190
    %v852 = vrot.slane %v850, 2
    %v854 = vmul.f32 %v849, %v852
    %v855 = vadd.f32 %v153, %v854
    %v856 = vtanh.pop %v855
    %v857 = vsub.f32 1.0, %v849
    %859 = vrot.lane.b32.xlu0 %v856, 64
    %v860 = vpop.permute.xlu0 %859
    %v862 = vmul.f32 %v857, %v860
    %v864 = vrot.slane %v701, 6
    %v866 = vmul.f32 %v849, %v864
    %v867 = vadd.f32 %v862, %v866
    %v868 = vpack.c.bf16 %v867, %v867
    %v870 = vrot.slane %v868, 3
    %871 = vrot.lane.b32.xlu0 %v870, 64
    %v872 = vpop.permute.xlu0 %871
    %v874 = vsel %vm236, %v872, 0
    %876 = vmatpush.bf16.msra.mxu0 0
    %877 = vmatpush.bf16.msra.mxu0 0
    %878 = vmatpush.bf16.msra.mxu0 0
    %879 = vmatpush.bf16.msra.mxu0 0
    %880 = vmatpush.bf16.msra.mxu0 %v332
    %881 = vmatpush.bf16.msra.mxu0 %v330
    %882 = vmatpush.bf16.msra.mxu0 %v328
    %883 = vmatpush.bf16.msra.mxu0 %v326
    %884 = vmatmul.bf16.gmra.mxu0 %v874
    %v885 = vpop.f32.mrf.mxu0
    %v886 = vadd.f32 %v184, %v885
    %v887 = vpop.f32.mrf.mxu0
    %888 = vdwg.mxu0
    %889 = vmatpush.bf16.msra.mxu0 0
    %890 = vmatpush.bf16.msra.mxu0 0
    %891 = vmatpush.bf16.msra.mxu0 0
    %892 = vmatpush.bf16.msra.mxu0 0
    %893 = vmatpush.bf16.msra.mxu0 %v333
    %894 = vmatpush.bf16.msra.mxu0 %v331
    %895 = vmatpush.bf16.msra.mxu0 %v329
    %896 = vmatpush.bf16.msra.mxu0 %v327
    %897 = vmatmul.bf16.gmra.mxu0 %v874
    %v898 = vpop.f32.mrf.mxu0
    %v899 = vadd.f32 %v185, %v898
    %v900 = vpop.f32.mrf.mxu0
    %901 = vdwg.mxu0
    %v902 = vpack.c.bf16 %v800, %v800
    %904 = vrot.lane.b32.xlu0 %v902, 64
    %v905 = vpop.permute.xlu0 %904
    %v907 = vsel %vm236, %v905, 0
    %909 = vmatpush.bf16.msra.mxu0 0
    %910 = vmatpush.bf16.msra.mxu0 0
    %911 = vmatpush.bf16.msra.mxu0 0
    %912 = vmatpush.bf16.msra.mxu0 0
    %913 = vmatpush.bf16.msra.mxu0 %v401
    %914 = vmatpush.bf16.msra.mxu0 %v399
    %915 = vmatpush.bf16.msra.mxu0 %v397
    %916 = vmatpush.bf16.msra.mxu0 %v395
    %917 = vmatmul.bf16.gmra.mxu0 %v907
    %v918 = vpop.f32.mrf.mxu0
    %v919 = vadd.f32 0.0, %v918
    %v920 = vpop.f32.mrf.mxu0
    %921 = vdwg.mxu0
    %922 = vmatpush.bf16.msra.mxu0 0
    %923 = vmatpush.bf16.msra.mxu0 0
    %924 = vmatpush.bf16.msra.mxu0 0
    %925 = vmatpush.bf16.msra.mxu0 0
    %926 = vmatpush.bf16.msra.mxu0 %v402
    %927 = vmatpush.bf16.msra.mxu0 %v400
    %928 = vmatpush.bf16.msra.mxu0 %v398
    %929 = vmatpush.bf16.msra.mxu0 %v396
    %930 = vmatmul.bf16.gmra.mxu0 %v907
    %v931 = vpop.f32.mrf.mxu0
    %v932 = vadd.f32 0.0, %v931
    %v933 = vpop.f32.mrf.mxu0
    %934 = vdwg.mxu0
    %v935 = vadd.f32 %v886, %v919
    %v936 = vxor.u32 %v935, 2147483648
    %v937 = vmul.f32 %v936, 1.442695
    %v938 = vpow.pop %v937
    %v939 = vadd.f32 %v938, 1.0
    %v940 = vrcp.pop %v939
    %v941 = vmul.f32 %v939, %v940
    %v942 = vsub.f32 1.0, %v941
    %v943 = vmul.f32 %v940, %v942
    %v944 = vadd.f32 %v940, %v943
    %vm945 = vweird.f32 %v939
    %vm946 = vweird.f32 %v940
    %vm947 = vmor %vm945, %vm946
    %v948 = vsel %vm947, %v940, %v944
    %v949 = vand.u32 2147483647, %v939
    %vm950 = vcmp.eq.f32.partialorder %v949, 8.507059e+37
    %v951 = vand.u32 %v939, 2147483648
    %v952 = vor.u32 1.1754944e-38, %v951
    %v953 = vsel %vm950, %v952, %v948
    %v954 = vmul.f32 1.0, %v953
    %v955 = vadd.f32 %v932, %v194
    %v956 = vmul.f32 %v954, %v955
    %v957 = vadd.f32 %v899, %v956
    %v958 = vtanh.pop %v957
    %v959 = vsub.f32 1.0, %v954
    %961 = vrot.lane.b32.xlu0 %v958, 64
    %v962 = vpop.permute.xlu0 %961
    %v964 = vmul.f32 %v959, %v962
    %v965 = vmul.f32 %v954, %v800
    %v966 = vadd.f32 %v964, %v965
    %967 = vmatpush.bf16.msra.mxu0 0
    %968 = vmatpush.bf16.msra.mxu0 0
    %969 = vmatpush.bf16.msra.mxu0 0
    %970 = vmatpush.bf16.msra.mxu0 0
    %971 = vmatpush.bf16.msra.mxu0 %v226
    %972 = vmatpush.bf16.msra.mxu0 %v224
    %973 = vmatpush.bf16.msra.mxu0 %v222
    %974 = vmatpush.bf16.msra.mxu0 %v220
    %975 = vmatmul.bf16.gmra.mxu0 %v874
    %v976 = vpop.f32.mrf.mxu0
    %v977 = vadd.f32 0.0, %v976
    %v978 = vpop.f32.mrf.mxu0
    %979 = vdwg.mxu0
    %980 = vmatpush.bf16.msra.mxu0 0
    %981 = vmatpush.bf16.msra.mxu0 0
    %982 = vmatpush.bf16.msra.mxu0 0
    %983 = vmatpush.bf16.msra.mxu0 0
    %984 = vmatpush.bf16.msra.mxu0 %v227
    %985 = vmatpush.bf16.msra.mxu0 %v225
    %986 = vmatpush.bf16.msra.mxu0 %v223
    %987 = vmatpush.bf16.msra.mxu0 %v221
    %988 = vmatmul.bf16.gmra.mxu0 %v874
    %v989 = vpop.f32.mrf.mxu0
    %v990 = vadd.f32 0.0, %v989
    %v991 = vpop.f32.mrf.mxu0
    %992 = vdwg.mxu0
    %v993 = vadd.f32 %v133, %v977
    %v994 = vxor.u32 %v993, 2147483648
    %v995 = vmul.f32 %v994, 1.442695
    %v996 = vpow.pop %v995
    %v997 = vadd.f32 %v996, 1.0
    %v998 = vrcp.pop %v997
    %v999 = vmul.f32 %v997, %v998
    %v1000 = vsub.f32 1.0, %v999
    %v1001 = vmul.f32 %v998, %v1000
    %v1002 = vadd.f32 %v998, %v1001
    %vm1003 = vweird.f32 %v997
    %vm1004 = vweird.f32 %v998
    %vm1005 = vmor %vm1003, %vm1004
    %v1006 = vsel %vm1005, %v998, %v1002
    %v1007 = vand.u32 2147483647, %v997
    %vm1008 = vcmp.eq.f32.partialorder %v1007, 8.507059e+37
    %v1009 = vand.u32 %v997, 2147483648
    %v1010 = vor.u32 1.1754944e-38, %v1009
    %v1011 = vsel %vm1008, %v1010, %v1006
    %v1012 = vmul.f32 1.0, %v1011
    %v1013 = vadd.f32 %v990, %v190
    %v1014 = vmul.f32 %v1012, %v1013
    %v1015 = vadd.f32 %v156, %v1014
    %v1016 = vtanh.pop %v1015
    %v1017 = vsub.f32 1.0, %v1012
    %1019 = vrot.lane.b32.xlu0 %v1016, 64
    %v1020 = vpop.permute.xlu0 %1019
    %v1022 = vmul.f32 %v1017, %v1020
    %v1024 = vrot.slane %v867, 6
    %v1026 = vmul.f32 %v1012, %v1024
    %v1027 = vadd.f32 %v1022, %v1026
    %v1028 = vpack.c.bf16 %v1027, %v1027
    %1030 = vrot.lane.b32.xlu0 %v1028, 64
    %v1031 = vpop.permute.xlu0 %1030
    %v1033 = vsel %vm236, %v1031, 0
    %1035 = vmatpush.bf16.msra.mxu0 0
    %1036 = vmatpush.bf16.msra.mxu0 0
    %1037 = vmatpush.bf16.msra.mxu0 0
    %1038 = vmatpush.bf16.msra.mxu0 0
    %1039 = vmatpush.bf16.msra.mxu0 %v332
    %1040 = vmatpush.bf16.msra.mxu0 %v330
    %1041 = vmatpush.bf16.msra.mxu0 %v328
    %1042 = vmatpush.bf16.msra.mxu0 %v326
    %1043 = vmatmul.bf16.gmra.mxu0 %v1033
    %v1044 = vpop.f32.mrf.mxu0
    %v1045 = vadd.f32 %v184, %v1044
    %v1046 = vpop.f32.mrf.mxu0
    %1047 = vdwg.mxu0
    %1048 = vmatpush.bf16.msra.mxu0 0
    %1049 = vmatpush.bf16.msra.mxu0 0
    %1050 = vmatpush.bf16.msra.mxu0 0
    %1051 = vmatpush.bf16.msra.mxu0 0
    %1052 = vmatpush.bf16.msra.mxu0 %v333
    %1053 = vmatpush.bf16.msra.mxu0 %v331
    %1054 = vmatpush.bf16.msra.mxu0 %v329
    %1055 = vmatpush.bf16.msra.mxu0 %v327
    %1056 = vmatmul.bf16.gmra.mxu0 %v1033
    %v1057 = vpop.f32.mrf.mxu0
    %v1058 = vadd.f32 %v185, %v1057
    %v1059 = vpop.f32.mrf.mxu0
    %1060 = vdwg.mxu0
    %v1061 = vpack.c.bf16 %v966, %v966
    %1063 = vrot.lane.b32.xlu0 %v1061, 64
    %v1064 = vpop.permute.xlu0 %1063
    %v1066 = vsel %vm236, %v1064, 0
    %1068 = vmatpush.bf16.msra.mxu0 0
    %1069 = vmatpush.bf16.msra.mxu0 0
    %1070 = vmatpush.bf16.msra.mxu0 0
    %1071 = vmatpush.bf16.msra.mxu0 0
    %1072 = vmatpush.bf16.msra.mxu0 %v401
    %1073 = vmatpush.bf16.msra.mxu0 %v399
    %1074 = vmatpush.bf16.msra.mxu0 %v397
    %1075 = vmatpush.bf16.msra.mxu0 %v395
    %1076 = vmatmul.bf16.gmra.mxu0 %v1066
    %v1077 = vpop.f32.mrf.mxu0
    %v1078 = vadd.f32 0.0, %v1077
    %v1079 = vpop.f32.mrf.mxu0
    %1080 = vdwg.mxu0
    %1081 = vmatpush.bf16.msra.mxu0 0
    %1082 = vmatpush.bf16.msra.mxu0 0
    %1083 = vmatpush.bf16.msra.mxu0 0
    %1084 = vmatpush.bf16.msra.mxu0 0
    %1085 = vmatpush.bf16.msra.mxu0 %v402
    %1086 = vmatpush.bf16.msra.mxu0 %v400
    %1087 = vmatpush.bf16.msra.mxu0 %v398
    %1088 = vmatpush.bf16.msra.mxu0 %v396
    %1089 = vmatmul.bf16.gmra.mxu0 %v1066
    %v1090 = vpop.f32.mrf.mxu0
    %v1091 = vadd.f32 0.0, %v1090
    %v1092 = vpop.f32.mrf.mxu0
    %1093 = vdwg.mxu0
    %v1094 = vadd.f32 %v1045, %v1078
    %v1095 = vxor.u32 %v1094, 2147483648
    %v1096 = vmul.f32 %v1095, 1.442695
    %v1097 = vpow.pop %v1096
    %v1098 = vadd.f32 %v1097, 1.0
    %v1099 = vrcp.pop %v1098
    %v1100 = vmul.f32 %v1098, %v1099
    %v1101 = vsub.f32 1.0, %v1100
    %v1102 = vmul.f32 %v1099, %v1101
    %v1103 = vadd.f32 %v1099, %v1102
    %vm1104 = vweird.f32 %v1098
    %vm1105 = vweird.f32 %v1099
    %vm1106 = vmor %vm1104, %vm1105
    %v1107 = vsel %vm1106, %v1099, %v1103
    %v1108 = vand.u32 2147483647, %v1098
    %vm1109 = vcmp.eq.f32.partialorder %v1108, 8.507059e+37
    %v1110 = vand.u32 %v1098, 2147483648
    %v1111 = vor.u32 1.1754944e-38, %v1110
    %v1112 = vsel %vm1109, %v1111, %v1107
    %v1113 = vmul.f32 1.0, %v1112
    %v1114 = vadd.f32 %v1091, %v194
    %v1115 = vmul.f32 %v1113, %v1114
    %v1116 = vadd.f32 %v1058, %v1115
    %v1117 = vtanh.pop %v1116
    %v1118 = vsub.f32 1.0, %v1113
    %1120 = vrot.lane.b32.xlu0 %v1117, 64
    %v1121 = vpop.permute.xlu0 %1120
    %v1123 = vmul.f32 %v1118, %v1121
    %v1124 = vmul.f32 %v1113, %v966
    %v1125 = vadd.f32 %v1123, %v1124
    %1126 = vmatpush.bf16.msra.mxu0 0
    %1127 = vmatpush.bf16.msra.mxu0 0
    %1128 = vmatpush.bf16.msra.mxu0 0
    %1129 = vmatpush.bf16.msra.mxu0 0
    %1130 = vmatpush.bf16.msra.mxu0 %v226
    %1131 = vmatpush.bf16.msra.mxu0 %v224
    %1132 = vmatpush.bf16.msra.mxu0 %v222
    %1133 = vmatpush.bf16.msra.mxu0 %v220
    %1134 = vmatmul.bf16.gmra.mxu0 %v1033
    %v1135 = vpop.f32.mrf.mxu0
    %v1136 = vadd.f32 0.0, %v1135
    %v1137 = vpop.f32.mrf.mxu0
    %1138 = vdwg.mxu0
    %1139 = vmatpush.bf16.msra.mxu0 0
    %1140 = vmatpush.bf16.msra.mxu0 0
    %1141 = vmatpush.bf16.msra.mxu0 0
    %1142 = vmatpush.bf16.msra.mxu0 0
    %1143 = vmatpush.bf16.msra.mxu0 %v227
    %1144 = vmatpush.bf16.msra.mxu0 %v225
    %1145 = vmatpush.bf16.msra.mxu0 %v223
    %1146 = vmatpush.bf16.msra.mxu0 %v221
    %1147 = vmatmul.bf16.gmra.mxu0 %v1033
    %v1148 = vpop.f32.mrf.mxu0
    %v1149 = vadd.f32 0.0, %v1148
    %v1150 = vpop.f32.mrf.mxu0
    %1151 = vdwg.mxu0
    %v1153 = vrot.slane %v1136, 6
    %v1155 = vadd.f32 %v133, %v1153
    %v1156 = vxor.u32 %v1155, 2147483648
    %v1157 = vmul.f32 %v1156, 1.442695
    %v1158 = vpow.pop %v1157
    %v1159 = vadd.f32 %v1158, 1.0
    %v1160 = vrcp.pop %v1159
    %v1161 = vmul.f32 %v1159, %v1160
    %v1162 = vsub.f32 1.0, %v1161
    %v1163 = vmul.f32 %v1160, %v1162
    %v1164 = vadd.f32 %v1160, %v1163
    %vm1165 = vweird.f32 %v1159
    %vm1166 = vweird.f32 %v1160
    %vm1167 = vmor %vm1165, %vm1166
    %v1168 = vsel %vm1167, %v1160, %v1164
    %v1169 = vand.u32 2147483647, %v1159
    %vm1170 = vcmp.eq.f32.partialorder %v1169, 8.507059e+37
    %v1171 = vand.u32 %v1159, 2147483648
    %v1172 = vor.u32 1.1754944e-38, %v1171
    %v1173 = vsel %vm1170, %v1172, %v1168
    %v1174 = vmul.f32 1.0, %v1173
    %v1175 = vadd.f32 %v1149, %v190
    %v1177 = vrot.slane %v1175, 6
    %v1179 = vmul.f32 %v1174, %v1177
    %v1180 = vadd.f32 %v156, %v1179
    %v1181 = vtanh.pop %v1180
    %v1182 = vsub.f32 1.0, %v1174
    %1184 = vrot.lane.b32.xlu0 %v1181, 64
    %v1185 = vpop.permute.xlu0 %1184
    %v1187 = vmul.f32 %v1182, %v1185
    %v1189 = vrot.slane %v1027, 6
    %v1191 = vmul.f32 %v1174, %v1189
    %v1192 = vadd.f32 %v1187, %v1191
    %v1193 = vpack.c.bf16 %v1192, %v1192
    %v1195 = vrot.slane %v1193, 1
    %1196 = vrot.lane.b32.xlu0 %v1195, 64
    %v1197 = vpop.permute.xlu0 %1196
    %v1199 = vsel %vm236, %v1197, 0
    %1201 = vmatpush.bf16.msra.mxu0 0
    %1202 = vmatpush.bf16.msra.mxu0 0
    %1203 = vmatpush.bf16.msra.mxu0 0
    %1204 = vmatpush.bf16.msra.mxu0 0
    %1205 = vmatpush.bf16.msra.mxu0 %v332
    %1206 = vmatpush.bf16.msra.mxu0 %v330
    %1207 = vmatpush.bf16.msra.mxu0 %v328
    %1208 = vmatpush.bf16.msra.mxu0 %v326
    %1209 = vmatmul.bf16.gmra.mxu0 %v1199
    %v1210 = vpop.f32.mrf.mxu0
    %v1211 = vadd.f32 %v184, %v1210
    %v1212 = vpop.f32.mrf.mxu0
    %1213 = vdwg.mxu0
    %1214 = vmatpush.bf16.msra.mxu0 0
    %1215 = vmatpush.bf16.msra.mxu0 0
    %1216 = vmatpush.bf16.msra.mxu0 0
    %1217 = vmatpush.bf16.msra.mxu0 0
    %1218 = vmatpush.bf16.msra.mxu0 %v333
    %1219 = vmatpush.bf16.msra.mxu0 %v331
    %1220 = vmatpush.bf16.msra.mxu0 %v329
    %1221 = vmatpush.bf16.msra.mxu0 %v327
    %1222 = vmatmul.bf16.gmra.mxu0 %v1199
    %v1223 = vpop.f32.mrf.mxu0
    %v1224 = vadd.f32 %v185, %v1223
    %v1225 = vpop.f32.mrf.mxu0
    %1226 = vdwg.mxu0
    %v1227 = vpack.c.bf16 %v1125, %v1125
    %1229 = vrot.lane.b32.xlu0 %v1227, 64
    %v1230 = vpop.permute.xlu0 %1229
    %v1232 = vsel %vm236, %v1230, 0
    %1234 = vmatpush.bf16.msra.mxu0 0
    %1235 = vmatpush.bf16.msra.mxu0 0
    %1236 = vmatpush.bf16.msra.mxu0 0
    %1237 = vmatpush.bf16.msra.mxu0 0
    %1238 = vmatpush.bf16.msra.mxu0 %v401
    %1239 = vmatpush.bf16.msra.mxu0 %v399
    %1240 = vmatpush.bf16.msra.mxu0 %v397
    %1241 = vmatpush.bf16.msra.mxu0 %v395
    %1242 = vmatmul.bf16.gmra.mxu0 %v1232
    %v1243 = vpop.f32.mrf.mxu0
    %v1244 = vadd.f32 0.0, %v1243
    %v1245 = vpop.f32.mrf.mxu0
    %1246 = vdwg.mxu0
    %1247 = vmatpush.bf16.msra.mxu0 0
    %1248 = vmatpush.bf16.msra.mxu0 0
    %1249 = vmatpush.bf16.msra.mxu0 0
    %1250 = vmatpush.bf16.msra.mxu0 0
    %1251 = vmatpush.bf16.msra.mxu0 %v402
    %1252 = vmatpush.bf16.msra.mxu0 %v400
    %1253 = vmatpush.bf16.msra.mxu0 %v398
    %1254 = vmatpush.bf16.msra.mxu0 %v396
    %1255 = vmatmul.bf16.gmra.mxu0 %v1232
    %v1256 = vpop.f32.mrf.mxu0
    %v1257 = vadd.f32 0.0, %v1256
    %v1258 = vpop.f32.mrf.mxu0
    %1259 = vdwg.mxu0
    %v1260 = vadd.f32 %v1211, %v1244
    %v1261 = vxor.u32 %v1260, 2147483648
    %v1262 = vmul.f32 %v1261, 1.442695
    %v1263 = vpow.pop %v1262
    %v1264 = vadd.f32 %v1263, 1.0
    %v1265 = vrcp.pop %v1264
    %v1266 = vmul.f32 %v1264, %v1265
    %v1267 = vsub.f32 1.0, %v1266
    %v1268 = vmul.f32 %v1265, %v1267
    %v1269 = vadd.f32 %v1265, %v1268
    %vm1270 = vweird.f32 %v1264
    %vm1271 = vweird.f32 %v1265
    %vm1272 = vmor %vm1270, %vm1271
    %v1273 = vsel %vm1272, %v1265, %v1269
    %v1274 = vand.u32 2147483647, %v1264
    %vm1275 = vcmp.eq.f32.partialorder %v1274, 8.507059e+37
    %v1276 = vand.u32 %v1264, 2147483648
    %v1277 = vor.u32 1.1754944e-38, %v1276
    %v1278 = vsel %vm1275, %v1277, %v1273
    %v1279 = vmul.f32 1.0, %v1278
    %v1280 = vadd.f32 %v1257, %v194
    %v1281 = vmul.f32 %v1279, %v1280
    %v1282 = vadd.f32 %v1224, %v1281
    %v1283 = vtanh.pop %v1282
    %v1284 = vsub.f32 1.0, %v1279
    %1286 = vrot.lane.b32.xlu0 %v1283, 64
    %v1287 = vpop.permute.xlu0 %1286
    %v1289 = vmul.f32 %v1284, %v1287
    %v1290 = vmul.f32 %v1279, %v1125
    %v1291 = vadd.f32 %v1289, %v1290
    %1292 = vmatpush.bf16.msra.mxu0 0
    %1293 = vmatpush.bf16.msra.mxu0 0
    %1294 = vmatpush.bf16.msra.mxu0 0
    %1295 = vmatpush.bf16.msra.mxu0 0
    %1296 = vmatpush.bf16.msra.mxu0 %v226
    %1297 = vmatpush.bf16.msra.mxu0 %v224
    %1298 = vmatpush.bf16.msra.mxu0 %v222
    %1299 = vmatpush.bf16.msra.mxu0 %v220
    %1300 = vmatmul.bf16.gmra.mxu0 %v1199
    %v1301 = vpop.f32.mrf.mxu0
    %v1302 = vadd.f32 0.0, %v1301
    %v1303 = vpop.f32.mrf.mxu0
    %1304 = vdwg.mxu0
    %1305 = vmatpush.bf16.msra.mxu0 0
    %1306 = vmatpush.bf16.msra.mxu0 0
    %1307 = vmatpush.bf16.msra.mxu0 0
    %1308 = vmatpush.bf16.msra.mxu0 0
    %1309 = vmatpush.bf16.msra.mxu0 %v227
    %1310 = vmatpush.bf16.msra.mxu0 %v225
    %1311 = vmatpush.bf16.msra.mxu0 %v223
    %1312 = vmatpush.bf16.msra.mxu0 %v221
    %1313 = vmatmul.bf16.gmra.mxu0 %v1199
    %v1314 = vpop.f32.mrf.mxu0
    %v1315 = vadd.f32 0.0, %v1314
    %v1316 = vpop.f32.mrf.mxu0
    %1317 = vdwg.mxu0
    %v1319 = vrot.slane %v1302, 4
    %v1321 = vadd.f32 %v133, %v1319
    %v1322 = vxor.u32 %v1321, 2147483648
    %v1323 = vmul.f32 %v1322, 1.442695
    %v1324 = vpow.pop %v1323
    %v1325 = vadd.f32 %v1324, 1.0
    %v1326 = vrcp.pop %v1325
    %v1327 = vmul.f32 %v1325, %v1326
    %v1328 = vsub.f32 1.0, %v1327
    %v1329 = vmul.f32 %v1326, %v1328
    %v1330 = vadd.f32 %v1326, %v1329
    %vm1331 = vweird.f32 %v1325
    %vm1332 = vweird.f32 %v1326
    %vm1333 = vmor %vm1331, %vm1332
    %v1334 = vsel %vm1333, %v1326, %v1330
    %v1335 = vand.u32 2147483647, %v1325
    %vm1336 = vcmp.eq.f32.partialorder %v1335, 8.507059e+37
    %v1337 = vand.u32 %v1325, 2147483648
    %v1338 = vor.u32 1.1754944e-38, %v1337
    %v1339 = vsel %vm1336, %v1338, %v1334
    %v1340 = vmul.f32 1.0, %v1339
    %v1341 = vadd.f32 %v1315, %v190
    %v1343 = vrot.slane %v1341, 4
    %v1345 = vmul.f32 %v1340, %v1343
    %v1346 = vadd.f32 %v156, %v1345
    %v1347 = vtanh.pop %v1346
    %v1348 = vsub.f32 1.0, %v1340
    %1350 = vrot.lane.b32.xlu0 %v1347, 64
    %v1351 = vpop.permute.xlu0 %1350
    %v1353 = vmul.f32 %v1348, %v1351
    %v1355 = vrot.slane %v1192, 6
    %v1357 = vmul.f32 %v1340, %v1355
    %v1358 = vadd.f32 %v1353, %v1357
    %v1359 = vpack.c.bf16 %v1358, %v1358
    %v1361 = vrot.slane %v1359, 2
    %1362 = vrot.lane.b32.xlu0 %v1361, 64
    %v1363 = vpop.permute.xlu0 %1362
    %v1365 = vsel %vm236, %v1363, 0
    %1367 = vmatpush.bf16.msra.mxu0 0
    %1368 = vmatpush.bf16.msra.mxu0 0
    %1369 = vmatpush.bf16.msra.mxu0 0
    %1370 = vmatpush.bf16.msra.mxu0 0
    %1371 = vmatpush.bf16.msra.mxu0 %v332
    %1372 = vmatpush.bf16.msra.mxu0 %v330
    %1373 = vmatpush.bf16.msra.mxu0 %v328
    %1374 = vmatpush.bf16.msra.mxu0 %v326
    %1375 = vmatmul.bf16.gmra.mxu0 %v1365
    %v1376 = vpop.f32.mrf.mxu0
    %v1377 = vadd.f32 %v184, %v1376
    %v1378 = vpop.f32.mrf.mxu0
    %1379 = vdwg.mxu0
    %1380 = vmatpush.bf16.msra.mxu0 0
    %1381 = vmatpush.bf16.msra.mxu0 0
    %1382 = vmatpush.bf16.msra.mxu0 0
    %1383 = vmatpush.bf16.msra.mxu0 0
    %1384 = vmatpush.bf16.msra.mxu0 %v333
    %1385 = vmatpush.bf16.msra.mxu0 %v331
    %1386 = vmatpush.bf16.msra.mxu0 %v329
    %1387 = vmatpush.bf16.msra.mxu0 %v327
    %1388 = vmatmul.bf16.gmra.mxu0 %v1365
    %v1389 = vpop.f32.mrf.mxu0
    %v1390 = vadd.f32 %v185, %v1389
    %v1391 = vpop.f32.mrf.mxu0
    %1392 = vdwg.mxu0
    %v1393 = vpack.c.bf16 %v1291, %v1291
    %1395 = vrot.lane.b32.xlu0 %v1393, 64
    %v1396 = vpop.permute.xlu0 %1395
    %v1398 = vsel %vm236, %v1396, 0
    %1400 = vmatpush.bf16.msra.mxu0 0
    %1401 = vmatpush.bf16.msra.mxu0 0
    %1402 = vmatpush.bf16.msra.mxu0 0
    %1403 = vmatpush.bf16.msra.mxu0 0
    %1404 = vmatpush.bf16.msra.mxu0 %v401
    %1405 = vmatpush.bf16.msra.mxu0 %v399
    %1406 = vmatpush.bf16.msra.mxu0 %v397
    %1407 = vmatpush.bf16.msra.mxu0 %v395
    %1408 = vmatmul.bf16.gmra.mxu0 %v1398
    %v1409 = vpop.f32.mrf.mxu0
    %v1410 = vadd.f32 0.0, %v1409
    %v1411 = vpop.f32.mrf.mxu0
    %1412 = vdwg.mxu0
    %1413 = vmatpush.bf16.msra.mxu0 0
    %1414 = vmatpush.bf16.msra.mxu0 0
    %1415 = vmatpush.bf16.msra.mxu0 0
    %1416 = vmatpush.bf16.msra.mxu0 0
    %1417 = vmatpush.bf16.msra.mxu0 %v402
    %1418 = vmatpush.bf16.msra.mxu0 %v400
    %1419 = vmatpush.bf16.msra.mxu0 %v398
    %1420 = vmatpush.bf16.msra.mxu0 %v396
    %1421 = vmatmul.bf16.gmra.mxu0 %v1398
    %v1422 = vpop.f32.mrf.mxu0
    %v1423 = vadd.f32 0.0, %v1422
    %v1424 = vpop.f32.mrf.mxu0
    %1425 = vdwg.mxu0
    %v1426 = vadd.f32 %v1377, %v1410
    %v1427 = vxor.u32 %v1426, 2147483648
    %v1428 = vmul.f32 %v1427, 1.442695
    %v1429 = vpow.pop %v1428
    %v1430 = vadd.f32 %v1429, 1.0
    %v1431 = vrcp.pop %v1430
    %v1432 = vmul.f32 %v1430, %v1431
    %v1433 = vsub.f32 1.0, %v1432
    %v1434 = vmul.f32 %v1431, %v1433
    %v1435 = vadd.f32 %v1431, %v1434
    %vm1436 = vweird.f32 %v1430
    %vm1437 = vweird.f32 %v1431
    %vm1438 = vmor %vm1436, %vm1437
    %v1439 = vsel %vm1438, %v1431, %v1435
    %v1440 = vand.u32 2147483647, %v1430
    %vm1441 = vcmp.eq.f32.partialorder %v1440, 8.507059e+37
    %v1442 = vand.u32 %v1430, 2147483648
    %v1443 = vor.u32 1.1754944e-38, %v1442
    %v1444 = vsel %vm1441, %v1443, %v1439
    %v1445 = vmul.f32 1.0, %v1444
    %v1446 = vadd.f32 %v1423, %v194
    %v1447 = vmul.f32 %v1445, %v1446
    %v1448 = vadd.f32 %v1390, %v1447
    %v1449 = vtanh.pop %v1448
    %v1450 = vsub.f32 1.0, %v1445
    %1452 = vrot.lane.b32.xlu0 %v1449, 64
    %v1453 = vpop.permute.xlu0 %1452
    %v1455 = vmul.f32 %v1450, %v1453
    %v1456 = vmul.f32 %v1445, %v1291
    %v1457 = vadd.f32 %v1455, %v1456
    %1458 = vmatpush.bf16.msra.mxu0 0
    %1459 = vmatpush.bf16.msra.mxu0 0
    %1460 = vmatpush.bf16.msra.mxu0 0
    %1461 = vmatpush.bf16.msra.mxu0 0
    %1462 = vmatpush.bf16.msra.mxu0 %v226
    %1463 = vmatpush.bf16.msra.mxu0 %v224
    %1464 = vmatpush.bf16.msra.mxu0 %v222
    %1465 = vmatpush.bf16.msra.mxu0 %v220
    %1466 = vmatmul.bf16.gmra.mxu0 %v1365
    %v1467 = vpop.f32.mrf.mxu0
    %v1468 = vadd.f32 0.0, %v1467
    %v1469 = vpop.f32.mrf.mxu0
    %1470 = vdwg.mxu0
    %1471 = vmatpush.bf16.msra.mxu0 0
    %1472 = vmatpush.bf16.msra.mxu0 0
    %1473 = vmatpush.bf16.msra.mxu0 0
    %1474 = vmatpush.bf16.msra.mxu0 0
    %1475 = vmatpush.bf16.msra.mxu0 %v227
    %1476 = vmatpush.bf16.msra.mxu0 %v225
    %1477 = vmatpush.bf16.msra.mxu0 %v223
    %1478 = vmatpush.bf16.msra.mxu0 %v221
    %1479 = vmatmul.bf16.gmra.mxu0 %v1365
    %v1480 = vpop.f32.mrf.mxu0
    %v1481 = vadd.f32 0.0, %v1480
    %v1482 = vpop.f32.mrf.mxu0
    %1483 = vdwg.mxu0
    %v1485 = vrot.slane %v1468, 2
    %v1487 = vadd.f32 %v133, %v1485
    %v1488 = vxor.u32 %v1487, 2147483648
    %v1489 = vmul.f32 %v1488, 1.442695
    %v1490 = vpow.pop %v1489
    %v1491 = vadd.f32 %v1490, 1.0
    %v1492 = vrcp.pop %v1491
    %v1493 = vmul.f32 %v1491, %v1492
    %v1494 = vsub.f32 1.0, %v1493
    %v1495 = vmul.f32 %v1492, %v1494
    %v1496 = vadd.f32 %v1492, %v1495
    %vm1497 = vweird.f32 %v1491
    %vm1498 = vweird.f32 %v1492
    %vm1499 = vmor %vm1497, %vm1498
    %v1500 = vsel %vm1499, %v1492, %v1496
    %v1501 = vand.u32 2147483647, %v1491
    %vm1502 = vcmp.eq.f32.partialorder %v1501, 8.507059e+37
    %v1503 = vand.u32 %v1491, 2147483648
    %v1504 = vor.u32 1.1754944e-38, %v1503
    %v1505 = vsel %vm1502, %v1504, %v1500
    %v1506 = vmul.f32 1.0, %v1505
    %v1507 = vadd.f32 %v1481, %v190
    %v1509 = vrot.slane %v1507, 2
    %v1511 = vmul.f32 %v1506, %v1509
    %v1512 = vadd.f32 %v156, %v1511
    %v1513 = vtanh.pop %v1512
    %v1514 = vsub.f32 1.0, %v1506
    %1516 = vrot.lane.b32.xlu0 %v1513, 64
    %v1517 = vpop.permute.xlu0 %1516
    %v1519 = vmul.f32 %v1514, %v1517
    %v1521 = vrot.slane %v1358, 6
    %v1523 = vmul.f32 %v1506, %v1521
    %v1524 = vadd.f32 %v1519, %v1523
    %v1525 = vpack.c.bf16 %v1524, %v1524
    %v1527 = vrot.slane %v1525, 3
    %1528 = vrot.lane.b32.xlu0 %v1527, 64
    %v1529 = vpop.permute.xlu0 %1528
    %v1531 = vsel %vm236, %v1529, 0
    %1533 = vmatpush.bf16.msra.mxu0 0
    %1534 = vmatpush.bf16.msra.mxu0 0
    %1535 = vmatpush.bf16.msra.mxu0 0
    %1536 = vmatpush.bf16.msra.mxu0 0
    %1537 = vmatpush.bf16.msra.mxu0 %v332
    %1538 = vmatpush.bf16.msra.mxu0 %v330
    %1539 = vmatpush.bf16.msra.mxu0 %v328
    %1540 = vmatpush.bf16.msra.mxu0 %v326
    %1541 = vmatmul.bf16.gmra.mxu0 %v1531
    %v1542 = vpop.f32.mrf.mxu0
    %v1543 = vadd.f32 %v184, %v1542
    %v1544 = vpop.f32.mrf.mxu0
    %1545 = vdwg.mxu0
    %1546 = vmatpush.bf16.msra.mxu0 0
    %1547 = vmatpush.bf16.msra.mxu0 0
    %1548 = vmatpush.bf16.msra.mxu0 0
    %1549 = vmatpush.bf16.msra.mxu0 0
    %1550 = vmatpush.bf16.msra.mxu0 %v333
    %1551 = vmatpush.bf16.msra.mxu0 %v331
    %1552 = vmatpush.bf16.msra.mxu0 %v329
    %1553 = vmatpush.bf16.msra.mxu0 %v327
    %1554 = vmatmul.bf16.gmra.mxu0 %v1531
    %v1555 = vpop.f32.mrf.mxu0
    %v1556 = vadd.f32 %v185, %v1555
    %v1557 = vpop.f32.mrf.mxu0
    %1558 = vdwg.mxu0
    %v1559 = vpack.c.bf16 %v1457, %v1457
    %1561 = vrot.lane.b32.xlu0 %v1559, 64
    %v1562 = vpop.permute.xlu0 %1561
    %v1564 = vsel %vm236, %v1562, 0
    %1566 = vmatpush.bf16.msra.mxu0 0
    %1567 = vmatpush.bf16.msra.mxu0 0
    %1568 = vmatpush.bf16.msra.mxu0 0
    %1569 = vmatpush.bf16.msra.mxu0 0
    %1570 = vmatpush.bf16.msra.mxu0 %v401
    %1571 = vmatpush.bf16.msra.mxu0 %v399
    %1572 = vmatpush.bf16.msra.mxu0 %v397
    %1573 = vmatpush.bf16.msra.mxu0 %v395
    %1574 = vmatmul.bf16.gmra.mxu0 %v1564
    %v1575 = vpop.f32.mrf.mxu0
    %v1576 = vadd.f32 0.0, %v1575
    %v1577 = vpop.f32.mrf.mxu0
    %1578 = vdwg.mxu0
    %1579 = vmatpush.bf16.msra.mxu0 0
    %1580 = vmatpush.bf16.msra.mxu0 0
    %1581 = vmatpush.bf16.msra.mxu0 0
    %1582 = vmatpush.bf16.msra.mxu0 0
    %1583 = vmatpush.bf16.msra.mxu0 %v402
    %1584 = vmatpush.bf16.msra.mxu0 %v400
    %1585 = vmatpush.bf16.msra.mxu0 %v398
    %1586 = vmatpush.bf16.msra.mxu0 %v396
    %1587 = vmatmul.bf16.gmra.mxu0 %v1564
    %v1588 = vpop.f32.mrf.mxu0
    %v1589 = vadd.f32 0.0, %v1588
    %v1590 = vpop.f32.mrf.mxu0
    %1591 = vdwg.mxu0
    %v1592 = vadd.f32 %v1543, %v1576
    %v1593 = vxor.u32 %v1592, 2147483648
    %v1594 = vmul.f32 %v1593, 1.442695
    %v1595 = vpow.pop %v1594
    %v1596 = vadd.f32 %v1595, 1.0
    %v1597 = vrcp.pop %v1596
    %v1598 = vmul.f32 %v1596, %v1597
    %v1599 = vsub.f32 1.0, %v1598
    %v1600 = vmul.f32 %v1597, %v1599
    %v1601 = vadd.f32 %v1597, %v1600
    %vm1602 = vweird.f32 %v1596
    %vm1603 = vweird.f32 %v1597
    %vm1604 = vmor %vm1602, %vm1603
    %v1605 = vsel %vm1604, %v1597, %v1601
    %v1606 = vand.u32 2147483647, %v1596
    %vm1607 = vcmp.eq.f32.partialorder %v1606, 8.507059e+37
    %v1608 = vand.u32 %v1596, 2147483648
    %v1609 = vor.u32 1.1754944e-38, %v1608
    %v1610 = vsel %vm1607, %v1609, %v1605
    %v1611 = vmul.f32 1.0, %v1610
    %v1612 = vadd.f32 %v1589, %v194
    %v1613 = vmul.f32 %v1611, %v1612
    %v1614 = vadd.f32 %v1556, %v1613
    %v1615 = vtanh.pop %v1614
    %v1616 = vsub.f32 1.0, %v1611
    %1618 = vrot.lane.b32.xlu0 %v1615, 64
    %v1619 = vpop.permute.xlu0 %1618
    %v1621 = vmul.f32 %v1616, %v1619
    %v1622 = vmul.f32 %v1611, %v1457
    %v1623 = vadd.f32 %v1621, %v1622
    %v1624 = vld [vmem:[%s9] sm:$0x1]
    %v1626 = vperm.slane %v1624, 0
    %1627 = vrot.lane.b32.xlu0 %v1626, 64
    %v1628 = vpop.permute.xlu0 %1627
    %v1630 = vmul.f32 %v1623, %v1628
    %1632 = vrot.lane.b32.xlu0 %v1630, 64
    %v1633 = vpop.permute.xlu0 %1632
    %vm1635 = vcmask 517120
    %v1636 = vsel %vm1635, %v1633, 0.0
    %1637 = vadd.xlane.f32.xlu0 %v1636
    %v1638 = vpop.xlane.xlu0 %1637
    %v1639 = vld [vmem:[#allocation2] sm:$0x1]
    %v1641 = vperm.slane %v1639, 0
    %v1643 = vadd.f32 %v1638, %v1641
    %vm1644 = vcmask 1024
    %1645 = vst.msk [vmem:[%s11] sm:$0x3] %vm1644, %v1643
    // Predicated region
    $region58: #{tpu_custom_call.1} parent=1 // pred_check
      _
    $region59: #{tpu_custom_call.1} parent=1 // pred_check_branch
      %1647 = sbr.rel (0) target = $region61
    $region60: #{tpu_custom_call.1} parent=1 // pred_region
      _
    $region61: #{tpu_custom_call.1} parent=1 // pred_fallthru
      _
    // Predicated region
    $region62: #{tpu_custom_call.1} parent=1 // pred_check
      _
    $region63: #{tpu_custom_call.1} parent=1 // pred_check_branch
      %1649 = sbr.rel (0) target = $region65
    $region64: #{tpu_custom_call.1} parent=1 // pred_region
      _
    $region65: #{tpu_custom_call.1} parent=1 // pred_fallthru
      _
    %1650 = vsyncpa [#allocation4], 1
    %1651 = vsyncpa [#allocation6], 1

</llo_original>
